<compile_context>
chip_gen: v6e
topology: v6e:2x2x1
jax: 0.10.0
libtpu: 0.0.40
codegen_flags: <defaults>
</compile_context>

<pallas_src>
import functools

import jax
import jax.numpy as jnp
from jax import lax
from jax.experimental import pallas as pl
from jax.experimental.pallas import tpu as pltpu


# ---------------------------------------------------------------------------
# In-kernel helpers
# ---------------------------------------------------------------------------
def _gelu_tanh(x):
    # tanh-form GELU (max |err| vs exact erf GELU ~5e-4, inside test tolerance).
    # jnp.tanh runs on the EUP, which has its own VLIW slot, relieving the VALU.
    c = 0.7978845608028654  # sqrt(2/pi)
    return 0.5 * x * (1.0 + jnp.tanh(c * (x + 0.044715 * x * x * x)))


def _group_norm1_flat(a, gamma_t, beta_t, eps=1e-5):
    # GroupNorm(num_groups=1) over one sample held as a lane-dense (H, C*W) slab.
    # One-pass stats: sum and sum-of-squares (var = E[x^2] - mean^2), f32 accumulation.
    inv_n = 1.0 / a.size
    mean = jnp.sum(a) * inv_n
    var = jnp.sum(a * a) * inv_n - mean * mean
    return (a - mean) * lax.rsqrt(var + eps) * gamma_t + beta_t


# ---------------------------------------------------------------------------
# Fused kernel: one batch sample per grid step
# ---------------------------------------------------------------------------
def _double_conv_kernel(x_ref, m1_ref, g1_ref, b1_ref, m2_ref, g2_ref, b2_ref,
                        out_ref, xpad_ref, hpad_ref, *, residual, conv_dtype):
    cin, H, W = x_ref.shape
    Wp = W + 2
    cmid = m1_ref.shape[2] // W
    cout = m2_ref.shape[2] // W

    # ---- stage the sample into a zero-padded VMEM scratch --------------------
    # Scratch layout: (H+2, Cin*(W+2)), flat column = ci*(W+2) + w (channel-major),
    # so each NCHW channel plane lands in a contiguous column block (no transpose).
    xpad_ref[...] = jnp.zeros_like(xpad_ref)
    for ci in range(cin):
        xpad_ref[1:H + 1, ci * Wp + 1: ci * Wp + 1 + W] = x_ref[ci].astype(jnp.float32)

    # ---- conv1: 3 banded matmuls (kx taps + Cin packed into K) ---------------
    acc1 = None
    for ky in range(3):
        part = jnp.dot(xpad_ref[ky:ky + H, :].astype(conv_dtype), m1_ref[ky],
                       preferred_element_type=jnp.float32)
        acc1 = part if acc1 is None else acc1 + part          # (H, Cmid*W)

    # ---- GroupNorm(1, cmid) + GELU on the lane-dense slab ---------------------
    h = _gelu_tanh(_group_norm1_flat(acc1, g1_ref[...], b1_ref[...]))

    # ---- stage h into a second zero-padded scratch for conv2 ------------------
    hpad_ref[...] = jnp.zeros_like(hpad_ref)
    for cm in range(cmid):
        hpad_ref[1:H + 1, cm * Wp + 1: cm * Wp + 1 + W] = h[:, cm * W:(cm + 1) * W]

    # ---- conv2: 3 banded matmuls ----------------------------------------------
    acc2 = None
    for ky in range(3):
        part = jnp.dot(hpad_ref[ky:ky + H, :].astype(conv_dtype), m2_ref[ky],
                       preferred_element_type=jnp.float32)
        acc2 = part if acc2 is None else acc2 + part          # (H, Cout*W)

    # ---- GroupNorm(1, cout) [+ residual GELU] ----------------------------------
    y = _group_norm1_flat(acc2, g2_ref[...], b2_ref[...])
    if residual:  # requires cin == cout (checked in the wrapper)
        xres = jnp.concatenate(
            [x_ref[ci].astype(jnp.float32) for ci in range(cin)], axis=1)
        y = _gelu_tanh(xres + y)

    out_ref[...] = y.astype(out_ref.dtype)   # single lane-dense (H, Cout*W) store


# ---------------------------------------------------------------------------
# Weight preprocessing: fold the 3x3 kernel into block-banded matmul weights
# ---------------------------------------------------------------------------
def _band_weight_matrices(w_hwio, W, dtype):
    """(3,3,Cin,Cout) conv kernel -> 3 matrices M[ky] of shape ((W+2)*Cin, W*Cout).

    M[ky][ci*(W+2)+u, co*W+w] = w[ky, u-w, ci, co] for 0 <= u-w <= 2, else 0, so
    conv_out[h, co*W + w] = sum_ky  xpad_flat[h+ky, :] @ M[ky]   (padding=1, bias=False).
    """
    _, _, cin, cout = w_hwio.shape
    mats = []
    for ky in range(3):
        m = jnp.zeros(((W + 2) * cin, W * cout), jnp.float32)
        for kx in range(3):
            shift = jnp.eye(W + 2, W, k=-kx, dtype=jnp.float32)    # row u == col w + kx
            m = m + jnp.kron(w_hwio[ky, kx].astype(jnp.float32), shift)
        mats.append(m)
    return jnp.stack(mats).astype(dtype)


# ---------------------------------------------------------------------------
# Wrapper (NCHW in / NCHW out, like the PyTorch module)
# ---------------------------------------------------------------------------
def double_conv(x_nchw, params, *, residual=False, conv_dtype=jnp.float32):
    w1, g1w, g1b, w2, g2w, g2b = params
    N, Cin, H, W = x_nchw.shape
    Cmid = w1.shape[3]
    Cout = w2.shape[3]
    if residual and Cin != Cout:
        raise ValueError("residual DoubleConv requires in_channels == out_channels")

    x = x_nchw.astype(jnp.float32)

    # Precompute banded conv matrices and lane-layout-tiled GroupNorm affine params.
    m1 = _band_weight_matrices(w1, W, conv_dtype)        # (3, (W+2)*Cin,  W*Cmid)
    m2 = _band_weight_matrices(w2, W, conv_dtype)        # (3, (W+2)*Cmid, W*Cout)
    g1t = jnp.repeat(g1w.reshape(1, Cmid).astype(jnp.float32), W, axis=1)  # (1, Cmid*W)
    b1t = jnp.repeat(g1b.reshape(1, Cmid).astype(jnp.float32), W, axis=1)
    g2t = jnp.repeat(g2w.reshape(1, Cout).astype(jnp.float32), W, axis=1)  # (1, Cout*W)
    b2t = jnp.repeat(g2b.reshape(1, Cout).astype(jnp.float32), W, axis=1)

    kernel = functools.partial(_double_conv_kernel, residual=residual,
                               conv_dtype=conv_dtype)
    out_flat = pl.pallas_call(
        kernel,
        out_shape=jax.ShapeDtypeStruct((N, H, Cout * W), jnp.float32),
        grid_spec=pltpu.PrefetchScalarGridSpec(
            num_scalar_prefetch=0,
            grid=(N,),
            in_specs=[
                pl.BlockSpec((None, Cin, H, W), lambda n: (n, 0, 0, 0)),
                pl.BlockSpec((3, (W + 2) * Cin, W * Cmid), lambda n: (0, 0, 0)),
                pl.BlockSpec((1, W * Cmid), lambda n: (0, 0)),
                pl.BlockSpec((1, W * Cmid), lambda n: (0, 0)),
                pl.BlockSpec((3, (W + 2) * Cmid, W * Cout), lambda n: (0, 0, 0)),
                pl.BlockSpec((1, W * Cout), lambda n: (0, 0)),
                pl.BlockSpec((1, W * Cout), lambda n: (0, 0)),
            ],
            out_specs=pl.BlockSpec((None, H, Cout * W), lambda n: (n, 0, 0)),
            scratch_shapes=[
                pltpu.VMEM((H + 2, Cin * (W + 2)), jnp.float32),   # padded x
                pltpu.VMEM((H + 2, Cmid * (W + 2)), jnp.float32),  # padded hidden
            ],
        ),
        compiler_params=pltpu.CompilerParams(
            dimension_semantics=("parallel",)),   # shards batch across TCs on v7x
    )(x, m1, g1t, b1t, m2, g2t, b2t)

    # (N, H, Cout*W) with column = co*W + w  ->  NCHW (single cheap output transpose;
    # the kernel-side store itself stays lane-dense).
    return jnp.transpose(out_flat.reshape(N, H, Cout, W), (0, 2, 1, 3))


# ---------------------------------------------------------------------------
# Deterministic parameter construction (shapes from DoubleConv.__init__)
# ---------------------------------------------------------------------------
def make_params(key, in_channels, out_channels, mid_channels=None):
    if mid_channels is None:
        mid_channels = out_channels
    ks = jax.random.split(key, 6)
    w1 = jax.random.normal(ks[0], (3, 3, in_channels, mid_channels),
                           jnp.float32) * (2.0 / (9 * in_channels)) ** 0.5
    g1w = 1.0 + 0.1 * jax.random.normal(ks[1], (1, mid_channels), jnp.float32)
    g1b = 0.1 * jax.random.normal(ks[2], (1, mid_channels), jnp.float32)
    w2 = jax.random.normal(ks[3], (3, 3, mid_channels, out_channels),
                           jnp.float32) * (2.0 / (9 * mid_channels)) ** 0.5
    g2w = 1.0 + 0.1 * jax.random.normal(ks[4], (1, out_channels), jnp.float32)
    g2b = 0.1 * jax.random.normal(ks[5], (1, out_channels), jnp.float32)
    return (w1, g1w, g1b, w2, g2w, g2b)


# ---------------------------------------------------------------------------
# Pure-JAX reference (for correctness checking only)
# ---------------------------------------------------------------------------
def ref_double_conv(x_nchw, params, *, residual=False):
    w1, g1w, g1b, w2, g2w, g2b = params
    dn = ('NCHW', 'HWIO', 'NCHW')

    def gn(x, gamma, beta):
        mean = jnp.mean(x, axis=(1, 2, 3), keepdims=True)
        var = jnp.mean((x - mean) ** 2, axis=(1, 2, 3), keepdims=True)
        xn = (x - mean) * lax.rsqrt(var + 1e-5)
        return xn * gamma.reshape(1, -1, 1, 1) + beta.reshape(1, -1, 1, 1)

    h = lax.conv_general_dilated(x_nchw, w1, (1, 1), ((1, 1), (1, 1)),
                                 dimension_numbers=dn)
    h = jax.nn.gelu(gn(h, g1w, g1b), approximate=False)
    y = lax.conv_general_dilated(h, w2, (1, 1), ((1, 1), (1, 1)),
                                 dimension_numbers=dn)
    y = gn(y, g2w, g2b)
    if residual:
        return jax.nn.gelu(x_nchw + y, approximate=False)
    return y


if __name__ == "__main__":
    key = jax.random.PRNGKey(0)
    kx, kp1, kp2 = jax.random.split(key, 3)

    # Case 1: plain DoubleConv(in=4, out=8), f32 MXU path
    x = jax.random.normal(kx, (2, 4, 16, 16), jnp.float32)
    params1 = make_params(kp1, 4, 8)
    out1 = jax.block_until_ready(double_conv(x, params1, residual=False))
    ref1 = ref_double_conv(x, params1, residual=False)
    assert out1.shape == (2, 8, 16, 16)
    err1 = float(jnp.max(jnp.abs(out1 - ref1)))
    assert err1 < 2e-3, f"case1 mismatch: {err1}"

    # Case 2: residual DoubleConv(in=8, out=8, residual=True), f32 MXU path
    x2 = jax.random.normal(jax.random.PRNGKey(1), (2, 8, 16, 16), jnp.float32)
    params2 = make_params(kp2, 8, 8)
    out2 = jax.block_until_ready(double_conv(x2, params2, residual=True))
    ref2 = ref_double_conv(x2, params2, residual=True)
    assert out2.shape == (2, 8, 16, 16)
    err2 = float(jnp.max(jnp.abs(out2 - ref2)))
    assert err2 < 2e-3, f"case2 mismatch: {err2}"

    # Case 3: bf16 MXU operands (f32 accumulation), per the perf review; looser tol.
    out3 = jax.block_until_ready(
        double_conv(x2, params2, residual=True, conv_dtype=jnp.bfloat16))
    err3 = float(jnp.max(jnp.abs(out3 - ref2)))
    assert err3 < 3e-2, f"case3 (bf16) mismatch: {err3}"

    print("KERNEL_OK")
</pallas_src>

<mosaic_0001>
module attributes {stable_mosaic.version = 11 : i64} {
  func.func @_double_conv_kernel(%arg0: i32, %arg1: memref<1x4x16x16xf32, #tpu.memory_space<vmem>>, %arg2: memref<3x72x128xf32, #tpu.memory_space<vmem>>, %arg3: memref<1x128xf32, #tpu.memory_space<vmem>>, %arg4: memref<1x128xf32, #tpu.memory_space<vmem>>, %arg5: memref<3x144x128xf32, #tpu.memory_space<vmem>>, %arg6: memref<1x128xf32, #tpu.memory_space<vmem>>, %arg7: memref<1x128xf32, #tpu.memory_space<vmem>>, %arg8: memref<1x16x128xf32, #tpu.memory_space<vmem>>, %arg9: memref<18x72xf32, #tpu.memory_space<vmem>>, %arg10: memref<18x144xf32, #tpu.memory_space<vmem>>) attributes {dimension_semantics = [#tpu.dimension_semantics<parallel>], iteration_bounds = array<i64: 2>, scalar_prefetch = 0 : i64, scratch_operands = 2 : i64, tpu.core_type = #tpu.core_type<tc>, window_params = [{transform_indices = @transform_0, window_bounds = array<i64: 1, 4, 16, 16>}, {pipeline_mode = #tpu.pipeline_mode<synchronous>, transform_indices = @transform_1, window_bounds = array<i64: 3, 72, 128>}, {pipeline_mode = #tpu.pipeline_mode<synchronous>, transform_indices = @transform_2, window_bounds = array<i64: 1, 128>}, {pipeline_mode = #tpu.pipeline_mode<synchronous>, transform_indices = @transform_3, window_bounds = array<i64: 1, 128>}, {pipeline_mode = #tpu.pipeline_mode<synchronous>, transform_indices = @transform_4, window_bounds = array<i64: 3, 144, 128>}, {pipeline_mode = #tpu.pipeline_mode<synchronous>, transform_indices = @transform_5, window_bounds = array<i64: 1, 128>}, {pipeline_mode = #tpu.pipeline_mode<synchronous>, transform_indices = @transform_6, window_bounds = array<i64: 1, 128>}, {transform_indices = @transform_7, window_bounds = array<i64: 1, 16, 128>}]} {
    %cst = arith.constant 0.000000e+00 : f32
    %0 = vector.broadcast %cst : f32 to vector<18x72xf32>
    %c0 = arith.constant 0 : index
    %c0_0 = arith.constant 0 : index
    %1 = vector.load %arg9[%c0, %c0_0] : memref<18x72xf32, #tpu.memory_space<vmem>>, vector<18x72xf32>
    tpu.vector_store %arg9[%c0, %c0_0], %0 {strides = array<i32>} : memref<18x72xf32, #tpu.memory_space<vmem>>, vector<18x72xf32>,
    %c0_1 = arith.constant 0 : index
    %c0_2 = arith.constant 0 : index
    %c0_3 = arith.constant 0 : index
    %c0_4 = arith.constant 0 : index
    %2 = vector.load %arg1[%c0_1, %c0_2, %c0_3, %c0_4] : memref<1x4x16x16xf32, #tpu.memory_space<vmem>>, vector<1x1x16x16xf32>
    %3 = vector.shape_cast %2 : vector<1x1x16x16xf32> to vector<16x16xf32>
    %c1 = arith.constant 1 : index
    %c1_5 = arith.constant 1 : index
    %4 = vector.load %arg9[%c1, %c1_5] : memref<18x72xf32, #tpu.memory_space<vmem>>, vector<16x16xf32>
    tpu.vector_store %arg9[%c1, %c1_5], %3 {strides = array<i32>} : memref<18x72xf32, #tpu.memory_space<vmem>>, vector<16x16xf32>,
    %c0_6 = arith.constant 0 : index
    %c1_7 = arith.constant 1 : index
    %c0_8 = arith.constant 0 : index
    %c0_9 = arith.constant 0 : index
    %5 = vector.load %arg1[%c0_6, %c1_7, %c0_8, %c0_9] : memref<1x4x16x16xf32, #tpu.memory_space<vmem>>, vector<1x1x16x16xf32>
    %6 = vector.shape_cast %5 : vector<1x1x16x16xf32> to vector<16x16xf32>
    %c1_10 = arith.constant 1 : index
    %c19 = arith.constant 19 : index
    %7 = vector.load %arg9[%c1_10, %c19] : memref<18x72xf32, #tpu.memory_space<vmem>>, vector<16x16xf32>
    tpu.vector_store %arg9[%c1_10, %c19], %6 {strides = array<i32>} : memref<18x72xf32, #tpu.memory_space<vmem>>, vector<16x16xf32>,
    %c0_11 = arith.constant 0 : index
    %c2 = arith.constant 2 : index
    %c0_12 = arith.constant 0 : index
    %c0_13 = arith.constant 0 : index
    %8 = vector.load %arg1[%c0_11, %c2, %c0_12, %c0_13] : memref<1x4x16x16xf32, #tpu.memory_space<vmem>>, vector<1x1x16x16xf32>
    %9 = vector.shape_cast %8 : vector<1x1x16x16xf32> to vector<16x16xf32>
    %c1_14 = arith.constant 1 : index
    %c37 = arith.constant 37 : index
    %10 = vector.load %arg9[%c1_14, %c37] : memref<18x72xf32, #tpu.memory_space<vmem>>, vector<16x16xf32>
    tpu.vector_store %arg9[%c1_14, %c37], %9 {strides = array<i32>} : memref<18x72xf32, #tpu.memory_space<vmem>>, vector<16x16xf32>,
    %c0_15 = arith.constant 0 : index
    %c3 = arith.constant 3 : index
    %c0_16 = arith.constant 0 : index
    %c0_17 = arith.constant 0 : index
    %11 = vector.load %arg1[%c0_15, %c3, %c0_16, %c0_17] : memref<1x4x16x16xf32, #tpu.memory_space<vmem>>, vector<1x1x16x16xf32>
    %12 = vector.shape_cast %11 : vector<1x1x16x16xf32> to vector<16x16xf32>
    %c1_18 = arith.constant 1 : index
    %c55 = arith.constant 55 : index
    %13 = vector.load %arg9[%c1_18, %c55] : memref<18x72xf32, #tpu.memory_space<vmem>>, vector<16x16xf32>
    tpu.vector_store %arg9[%c1_18, %c55], %12 {strides = array<i32>} : memref<18x72xf32, #tpu.memory_space<vmem>>, vector<16x16xf32>,
    %c0_19 = arith.constant 0 : index
    %c0_20 = arith.constant 0 : index
    %14 = vector.load %arg9[%c0_19, %c0_20] : memref<18x72xf32, #tpu.memory_space<vmem>>, vector<16x72xf32>
    %c0_21 = arith.constant 0 : index
    %c0_22 = arith.constant 0 : index
    %c0_23 = arith.constant 0 : index
    %15 = vector.load %arg2[%c0_21, %c0_22, %c0_23] : memref<3x72x128xf32, #tpu.memory_space<vmem>>, vector<1x72x128xf32>
    %16 = vector.shape_cast %15 : vector<1x72x128xf32> to vector<72x128xf32>
    %cst_24 = arith.constant dense<0.000000e+00> : vector<16x128xf32>
    %17 = tpu.matmul %14, %16, %cst_24 {dimension_numbers = #tpu.dot_dimension_numbers<[1], [0], [0], [1], [0, 0, 1, 1], [], []>} : vector<16x72xf32>, vector<72x128xf32>, vector<16x128xf32> -> vector<16x128xf32>
    %c1_25 = arith.constant 1 : index
    %c0_26 = arith.constant 0 : index
    %18 = vector.load %arg9[%c1_25, %c0_26] : memref<18x72xf32, #tpu.memory_space<vmem>>, vector<16x72xf32>
    %c1_27 = arith.constant 1 : index
    %c0_28 = arith.constant 0 : index
    %c0_29 = arith.constant 0 : index
    %19 = vector.load %arg2[%c1_27, %c0_28, %c0_29] : memref<3x72x128xf32, #tpu.memory_space<vmem>>, vector<1x72x128xf32>
    %20 = vector.shape_cast %19 : vector<1x72x128xf32> to vector<72x128xf32>
    %cst_30 = arith.constant dense<0.000000e+00> : vector<16x128xf32>
    %21 = tpu.matmul %18, %20, %cst_30 {dimension_numbers = #tpu.dot_dimension_numbers<[1], [0], [0], [1], [0, 0, 1, 1], [], []>} : vector<16x72xf32>, vector<72x128xf32>, vector<16x128xf32> -> vector<16x128xf32>
    %22 = arith.addf %17, %21 : vector<16x128xf32>
    %c2_31 = arith.constant 2 : index
    %c0_32 = arith.constant 0 : index
    %23 = vector.load %arg9[%c2_31, %c0_32] : memref<18x72xf32, #tpu.memory_space<vmem>>, vector<16x72xf32>
    %c2_33 = arith.constant 2 : index
    %c0_34 = arith.constant 0 : index
    %c0_35 = arith.constant 0 : index
    %24 = vector.load %arg2[%c2_33, %c0_34, %c0_35] : memref<3x72x128xf32, #tpu.memory_space<vmem>>, vector<1x72x128xf32>
    %25 = vector.shape_cast %24 : vector<1x72x128xf32> to vector<72x128xf32>
    %cst_36 = arith.constant dense<0.000000e+00> : vector<16x128xf32>
    %26 = tpu.matmul %23, %25, %cst_36 {dimension_numbers = #tpu.dot_dimension_numbers<[1], [0], [0], [1], [0, 0, 1, 1], [], []>} : vector<16x72xf32>, vector<72x128xf32>, vector<16x128xf32> -> vector<16x128xf32>
    %27 = arith.addf %22, %26 : vector<16x128xf32>
    %c0_37 = arith.constant 0 : index
    %c0_38 = arith.constant 0 : index
    %28 = vector.load %arg3[%c0_37, %c0_38] : memref<1x128xf32, #tpu.memory_space<vmem>>, vector<1x128xf32>
    %c0_39 = arith.constant 0 : index
    %c0_40 = arith.constant 0 : index
    %29 = vector.load %arg4[%c0_39, %c0_40] : memref<1x128xf32, #tpu.memory_space<vmem>>, vector<1x128xf32>
    %30 = vector.shape_cast %27 : vector<16x128xf32> to vector<1x16x128xf32>
    %cst_41 = arith.constant dense<0.000000e+00> : vector<1xf32>
    %31 = vector.multi_reduction <add>, %30, %cst_41 [1, 2] : vector<1x16x128xf32> to vector<1xf32>
    %32 = vector.shape_cast %31 : vector<1xf32> to vector<1x1x1xf32>
    %33 = vector.extract %32[0, 0, 0] : f32 from vector<1x1x1xf32>
    %cst_42 = arith.constant 4.8828125E-4 : f32
    %34 = arith.mulf %33, %cst_42 : f32
    %35 = arith.mulf %27, %27 : vector<16x128xf32>
    %36 = vector.shape_cast %35 : vector<16x128xf32> to vector<1x16x128xf32>
    %cst_43 = arith.constant dense<0.000000e+00> : vector<1xf32>
    %37 = vector.multi_reduction <add>, %36, %cst_43 [1, 2] : vector<1x16x128xf32> to vector<1xf32>
    %38 = vector.shape_cast %37 : vector<1xf32> to vector<1x1x1xf32>
    %39 = vector.extract %38[0, 0, 0] : f32 from vector<1x1x1xf32>
    %cst_44 = arith.constant 4.8828125E-4 : f32
    %40 = arith.mulf %39, %cst_44 : f32
    %41 = arith.mulf %34, %34 : f32
    %42 = arith.subf %40, %41 : f32
    %43 = vector.broadcast %34 : f32 to vector<16x128xf32>
    %44 = arith.subf %27, %43 : vector<16x128xf32>
    %cst_45 = arith.constant 9.99999974E-6 : f32
    %45 = arith.addf %42, %cst_45 : f32
    %46 = math.rsqrt %45 : f32
    %47 = vector.broadcast %46 : f32 to vector<16x128xf32>
    %48 = arith.mulf %44, %47 : vector<16x128xf32>
    %49 = vector.broadcast %28 : vector<1x128xf32> to vector<16x128xf32>
    %50 = arith.mulf %48, %49 : vector<16x128xf32>
    %51 = vector.broadcast %29 : vector<1x128xf32> to vector<16x128xf32>
    %52 = arith.addf %50, %51 : vector<16x128xf32>
    %cst_46 = arith.constant 5.000000e-01 : f32
    %53 = vector.broadcast %cst_46 : f32 to vector<16x128xf32>
    %54 = arith.mulf %53, %52 : vector<16x128xf32>
    %cst_47 = arith.constant 4.471500e-02 : f32
    %55 = vector.broadcast %cst_47 : f32 to vector<16x128xf32>
    %56 = arith.mulf %55, %52 : vector<16x128xf32>
    %57 = arith.mulf %56, %52 : vector<16x128xf32>
    %58 = arith.mulf %57, %52 : vector<16x128xf32>
    %59 = arith.addf %52, %58 : vector<16x128xf32>
    %cst_48 = arith.constant 0.797884583 : f32
    %60 = vector.broadcast %cst_48 : f32 to vector<16x128xf32>
    %61 = arith.mulf %60, %59 : vector<16x128xf32>
    %62 = math.tanh %61 : vector<16x128xf32>
    %cst_49 = arith.constant 1.000000e+00 : f32
    %63 = vector.broadcast %cst_49 : f32 to vector<16x128xf32>
    %64 = arith.addf %63, %62 : vector<16x128xf32>
    %65 = arith.mulf %54, %64 : vector<16x128xf32>
    %cst_50 = arith.constant 0.000000e+00 : f32
    %66 = vector.broadcast %cst_50 : f32 to vector<18x144xf32>
    %c0_51 = arith.constant 0 : index
    %c0_52 = arith.constant 0 : index
    %67 = vector.load %arg10[%c0_51, %c0_52] : memref<18x144xf32, #tpu.memory_space<vmem>>, vector<18x144xf32>
    tpu.vector_store %arg10[%c0_51, %c0_52], %66 {strides = array<i32>} : memref<18x144xf32, #tpu.memory_space<vmem>>, vector<18x144xf32>,
    %68 = vector.extract_strided_slice %65 {offsets = [0, 0], sizes = [16, 16], strides = [1, 1]} : vector<16x128xf32> to vector<16x16xf32>
    %c1_53 = arith.constant 1 : index
    %c1_54 = arith.constant 1 : index
    %69 = vector.load %arg10[%c1_53, %c1_54] : memref<18x144xf32, #tpu.memory_space<vmem>>, vector<16x16xf32>
    tpu.vector_store %arg10[%c1_53, %c1_54], %68 {strides = array<i32>} : memref<18x144xf32, #tpu.memory_space<vmem>>, vector<16x16xf32>,
    %70 = vector.extract_strided_slice %65 {offsets = [0, 16], sizes = [16, 16], strides = [1, 1]} : vector<16x128xf32> to vector<16x16xf32>
    %c1_55 = arith.constant 1 : index
    %c19_56 = arith.constant 19 : index
    %71 = vector.load %arg10[%c1_55, %c19_56] : memref<18x144xf32, #tpu.memory_space<vmem>>, vector<16x16xf32>
    tpu.vector_store %arg10[%c1_55, %c19_56], %70 {strides = array<i32>} : memref<18x144xf32, #tpu.memory_space<vmem>>, vector<16x16xf32>,
    %72 = vector.extract_strided_slice %65 {offsets = [0, 32], sizes = [16, 16], strides = [1, 1]} : vector<16x128xf32> to vector<16x16xf32>
    %c1_57 = arith.constant 1 : index
    %c37_58 = arith.constant 37 : index
    %73 = vector.load %arg10[%c1_57, %c37_58] : memref<18x144xf32, #tpu.memory_space<vmem>>, vector<16x16xf32>
    tpu.vector_store %arg10[%c1_57, %c37_58], %72 {strides = array<i32>} : memref<18x144xf32, #tpu.memory_space<vmem>>, vector<16x16xf32>,
    %74 = vector.extract_strided_slice %65 {offsets = [0, 48], sizes = [16, 16], strides = [1, 1]} : vector<16x128xf32> to vector<16x16xf32>
    %c1_59 = arith.constant 1 : index
    %c55_60 = arith.constant 55 : index
    %75 = vector.load %arg10[%c1_59, %c55_60] : memref<18x144xf32, #tpu.memory_space<vmem>>, vector<16x16xf32>
    tpu.vector_store %arg10[%c1_59, %c55_60], %74 {strides = array<i32>} : memref<18x144xf32, #tpu.memory_space<vmem>>, vector<16x16xf32>,
    %76 = vector.extract_strided_slice %65 {offsets = [0, 64], sizes = [16, 16], strides = [1, 1]} : vector<16x128xf32> to vector<16x16xf32>
    %c1_61 = arith.constant 1 : index
    %c73 = arith.constant 73 : index
    %77 = vector.load %arg10[%c1_61, %c73] : memref<18x144xf32, #tpu.memory_space<vmem>>, vector<16x16xf32>
    tpu.vector_store %arg10[%c1_61, %c73], %76 {strides = array<i32>} : memref<18x144xf32, #tpu.memory_space<vmem>>, vector<16x16xf32>,
    %78 = vector.extract_strided_slice %65 {offsets = [0, 80], sizes = [16, 16], strides = [1, 1]} : vector<16x128xf32> to vector<16x16xf32>
    %c1_62 = arith.constant 1 : index
    %c91 = arith.constant 91 : index
    %79 = vector.load %arg10[%c1_62, %c91] : memref<18x144xf32, #tpu.memory_space<vmem>>, vector<16x16xf32>
    tpu.vector_store %arg10[%c1_62, %c91], %78 {strides = array<i32>} : memref<18x144xf32, #tpu.memory_space<vmem>>, vector<16x16xf32>,
    %80 = vector.extract_strided_slice %65 {offsets = [0, 96], sizes = [16, 16], strides = [1, 1]} : vector<16x128xf32> to vector<16x16xf32>
    %c1_63 = arith.constant 1 : index
    %c109 = arith.constant 109 : index
    %81 = vector.load %arg10[%c1_63, %c109] : memref<18x144xf32, #tpu.memory_space<vmem>>, vector<16x16xf32>
    tpu.vector_store %arg10[%c1_63, %c109], %80 {strides = array<i32>} : memref<18x144xf32, #tpu.memory_space<vmem>>, vector<16x16xf32>,
    %82 = vector.extract_strided_slice %65 {offsets = [0, 112], sizes = [16, 16], strides = [1, 1]} : vector<16x128xf32> to vector<16x16xf32>
    %c1_64 = arith.constant 1 : index
    %c127 = arith.constant 127 : index
    %83 = vector.load %arg10[%c1_64, %c127] : memref<18x144xf32, #tpu.memory_space<vmem>>, vector<16x16xf32>
    tpu.vector_store %arg10[%c1_64, %c127], %82 {strides = array<i32>} : memref<18x144xf32, #tpu.memory_space<vmem>>, vector<16x16xf32>,
    %c0_65 = arith.constant 0 : index
    %c0_66 = arith.constant 0 : index
    %84 = vector.load %arg10[%c0_65, %c0_66] : memref<18x144xf32, #tpu.memory_space<vmem>>, vector<16x144xf32>
    %c0_67 = arith.constant 0 : index
    %c0_68 = arith.constant 0 : index
    %c0_69 = arith.constant 0 : index
    %85 = vector.load %arg5[%c0_67, %c0_68, %c0_69] : memref<3x144x128xf32, #tpu.memory_space<vmem>>, vector<1x144x128xf32>
    %86 = vector.shape_cast %85 : vector<1x144x128xf32> to vector<144x128xf32>
    %cst_70 = arith.constant dense<0.000000e+00> : vector<16x128xf32>
    %87 = tpu.matmul %84, %86, %cst_70 {dimension_numbers = #tpu.dot_dimension_numbers<[1], [0], [0], [1], [0, 0, 1, 1], [], []>} : vector<16x144xf32>, vector<144x128xf32>, vector<16x128xf32> -> vector<16x128xf32>
    %c1_71 = arith.constant 1 : index
    %c0_72 = arith.constant 0 : index
    %88 = vector.load %arg10[%c1_71, %c0_72] : memref<18x144xf32, #tpu.memory_space<vmem>>, vector<16x144xf32>
    %c1_73 = arith.constant 1 : index
    %c0_74 = arith.constant 0 : index
    %c0_75 = arith.constant 0 : index
    %89 = vector.load %arg5[%c1_73, %c0_74, %c0_75] : memref<3x144x128xf32, #tpu.memory_space<vmem>>, vector<1x144x128xf32>
    %90 = vector.shape_cast %89 : vector<1x144x128xf32> to vector<144x128xf32>
    %cst_76 = arith.constant dense<0.000000e+00> : vector<16x128xf32>
    %91 = tpu.matmul %88, %90, %cst_76 {dimension_numbers = #tpu.dot_dimension_numbers<[1], [0], [0], [1], [0, 0, 1, 1], [], []>} : vector<16x144xf32>, vector<144x128xf32>, vector<16x128xf32> -> vector<16x128xf32>
    %92 = arith.addf %87, %91 : vector<16x128xf32>
    %c2_77 = arith.constant 2 : index
    %c0_78 = arith.constant 0 : index
    %93 = vector.load %arg10[%c2_77, %c0_78] : memref<18x144xf32, #tpu.memory_space<vmem>>, vector<16x144xf32>
    %c2_79 = arith.constant 2 : index
    %c0_80 = arith.constant 0 : index
    %c0_81 = arith.constant 0 : index
    %94 = vector.load %arg5[%c2_79, %c0_80, %c0_81] : memref<3x144x128xf32, #tpu.memory_space<vmem>>, vector<1x144x128xf32>
    %95 = vector.shape_cast %94 : vector<1x144x128xf32> to vector<144x128xf32>
    %cst_82 = arith.constant dense<0.000000e+00> : vector<16x128xf32>
    %96 = tpu.matmul %93, %95, %cst_82 {dimension_numbers = #tpu.dot_dimension_numbers<[1], [0], [0], [1], [0, 0, 1, 1], [], []>} : vector<16x144xf32>, vector<144x128xf32>, vector<16x128xf32> -> vector<16x128xf32>
    %97 = arith.addf %92, %96 : vector<16x128xf32>
    %c0_83 = arith.constant 0 : index
    %c0_84 = arith.constant 0 : index
    %98 = vector.load %arg6[%c0_83, %c0_84] : memref<1x128xf32, #tpu.memory_space<vmem>>, vector<1x128xf32>
    %c0_85 = arith.constant 0 : index
    %c0_86 = arith.constant 0 : index
    %99 = vector.load %arg7[%c0_85, %c0_86] : memref<1x128xf32, #tpu.memory_space<vmem>>, vector<1x128xf32>
    %100 = vector.shape_cast %97 : vector<16x128xf32> to vector<1x16x128xf32>
    %cst_87 = arith.constant dense<0.000000e+00> : vector<1xf32>
    %101 = vector.multi_reduction <add>, %100, %cst_87 [1, 2] : vector<1x16x128xf32> to vector<1xf32>
    %102 = vector.shape_cast %101 : vector<1xf32> to vector<1x1x1xf32>
    %103 = vector.extract %102[0, 0, 0] : f32 from vector<1x1x1xf32>
    %cst_88 = arith.constant 4.8828125E-4 : f32
    %104 = arith.mulf %103, %cst_88 : f32
    %105 = arith.mulf %97, %97 : vector<16x128xf32>
    %106 = vector.shape_cast %105 : vector<16x128xf32> to vector<1x16x128xf32>
    %cst_89 = arith.constant dense<0.000000e+00> : vector<1xf32>
    %107 = vector.multi_reduction <add>, %106, %cst_89 [1, 2] : vector<1x16x128xf32> to vector<1xf32>
    %108 = vector.shape_cast %107 : vector<1xf32> to vector<1x1x1xf32>
    %109 = vector.extract %108[0, 0, 0] : f32 from vector<1x1x1xf32>
    %cst_90 = arith.constant 4.8828125E-4 : f32
    %110 = arith.mulf %109, %cst_90 : f32
    %111 = arith.mulf %104, %104 : f32
    %112 = arith.subf %110, %111 : f32
    %113 = vector.broadcast %104 : f32 to vector<16x128xf32>
    %114 = arith.subf %97, %113 : vector<16x128xf32>
    %cst_91 = arith.constant 9.99999974E-6 : f32
    %115 = arith.addf %112, %cst_91 : f32
    %116 = math.rsqrt %115 : f32
    %117 = vector.broadcast %116 : f32 to vector<16x128xf32>
    %118 = arith.mulf %114, %117 : vector<16x128xf32>
    %119 = vector.broadcast %98 : vector<1x128xf32> to vector<16x128xf32>
    %120 = arith.mulf %118, %119 : vector<16x128xf32>
    %121 = vector.broadcast %99 : vector<1x128xf32> to vector<16x128xf32>
    %122 = arith.addf %120, %121 : vector<16x128xf32>
    %c0_92 = arith.constant 0 : index
    %c0_93 = arith.constant 0 : index
    %c0_94 = arith.constant 0 : index
    %123 = vector.load %arg8[%c0_92, %c0_93, %c0_94] : memref<1x16x128xf32, #tpu.memory_space<vmem>>, vector<1x16x128xf32>
    %124 = vector.shape_cast %123 : vector<1x16x128xf32> to vector<16x128xf32>
    %125 = vector.shape_cast %122 : vector<16x128xf32> to vector<1x16x128xf32>
    tpu.vector_store %arg8[%c0_92, %c0_93, %c0_94], %125 {strides = array<i32>} : memref<1x16x128xf32, #tpu.memory_space<vmem>>, vector<1x16x128xf32>,
    return
  }
  func.func @transform_0(%arg0: i32) -> (i32, i32, i32, i32) {
    %c0_i32 = arith.constant 0 : i32
    %c0_i32_0 = arith.constant 0 : i32
    %c0_i32_1 = arith.constant 0 : i32
    %c0_i32_2 = arith.constant 0 : i32
    return %arg0, %c0_i32, %c0_i32_0, %c0_i32_1 : i32, i32, i32, i32
  }
  func.func @transform_1(%arg0: i32) -> (i32, i32, i32) {
    %c0_i32 = arith.constant 0 : i32
    %c0_i32_0 = arith.constant 0 : i32
    %c0_i32_1 = arith.constant 0 : i32
    %c0_i32_2 = arith.constant 0 : i32
    return %c0_i32, %c0_i32_0, %c0_i32_1 : i32, i32, i32
  }
  func.func @transform_2(%arg0: i32) -> (i32, i32) {
    %c0_i32 = arith.constant 0 : i32
    %c0_i32_0 = arith.constant 0 : i32
    %c0_i32_1 = arith.constant 0 : i32
    return %c0_i32, %c0_i32_0 : i32, i32
  }
  func.func @transform_3(%arg0: i32) -> (i32, i32) {
    %c0_i32 = arith.constant 0 : i32
    %c0_i32_0 = arith.constant 0 : i32
    %c0_i32_1 = arith.constant 0 : i32
    return %c0_i32, %c0_i32_0 : i32, i32
  }
  func.func @transform_4(%arg0: i32) -> (i32, i32, i32) {
    %c0_i32 = arith.constant 0 : i32
    %c0_i32_0 = arith.constant 0 : i32
    %c0_i32_1 = arith.constant 0 : i32
    %c0_i32_2 = arith.constant 0 : i32
    return %c0_i32, %c0_i32_0, %c0_i32_1 : i32, i32, i32
  }
  func.func @transform_5(%arg0: i32) -> (i32, i32) {
    %c0_i32 = arith.constant 0 : i32
    %c0_i32_0 = arith.constant 0 : i32
    %c0_i32_1 = arith.constant 0 : i32
    return %c0_i32, %c0_i32_0 : i32, i32
  }
  func.func @transform_6(%arg0: i32) -> (i32, i32) {
    %c0_i32 = arith.constant 0 : i32
    %c0_i32_0 = arith.constant 0 : i32
    %c0_i32_1 = arith.constant 0 : i32
    return %c0_i32, %c0_i32_0 : i32, i32
  }
  func.func @transform_7(%arg0: i32) -> (i32, i32, i32) {
    %c0_i32 = arith.constant 0 : i32
    %c0_i32_0 = arith.constant 0 : i32
    %c0_i32_1 = arith.constant 0 : i32
    return %arg0, %c0_i32, %c0_i32_0 : i32, i32, i32
  }
}

</mosaic_0001>

<llo_original>
// kernel: tpu_custom_call.1
$region0: #{tpu_custom_call.1}
  #allocation0 [shape = 'u32[]', space=smem, size = 0x4, offset = 0x4, fixed_abs, tag = 'smem constant byte address 0x4 - core index']
  #allocation1 [shape = 'u32[144,128]{1,0:T(1,128)}', space=vmem, size = 0x12000, scoped, tag = 'internal scratch']
  #allocation2 [shape = 'f32[18,72]{1,0:T(8,128)}', space=vmem, size = 0x3000, scoped, tag = 'scratch operand']
  #allocation3 [shape = 'f32[18,144]{1,0:T(8,128)}', space=vmem, size = 0x6000, scoped, tag = 'scratch operand']
  %s0 = inlined_call_operand.hbm [shape: f32[2,4,16,16], index: 0, kind: input, shape index: {}]
  %s1 = inlined_call_operand.hbm [shape: f32[3,72,128], index: 1, kind: input, shape index: {}]
  %s2 = inlined_call_operand.vmem [shape: f32[1,128], index: 2, kind: input, shape index: {}]
  %s3 = inlined_call_operand.vmem [shape: f32[1,128], index: 3, kind: input, shape index: {}]
  %s4 = inlined_call_operand.hbm [shape: f32[3,144,128], index: 4, kind: input, shape index: {}]
  %s5 = inlined_call_operand.vmem [shape: f32[1,128], index: 5, kind: input, shape index: {}]
  %s6 = inlined_call_operand.vmem [shape: f32[1,128], index: 6, kind: input, shape index: {}]
  %s7 = inlined_call_operand.hbm [shape: f32[2,16,128], index: 7, kind: output, shape index: {}]
  %s8 = sld [smem:[#allocation0]]
  $region73: #{tpu_custom_call.1} parent=0
    _
  %s10 = ssub.s32 1, %s8
  %s11 = scalar_select 0, %s10, %s8
  $region1: #{tpu_custom_call.1} parent=0
    #allocation4 [shape = 'u8[65536]{0}', space=vmem, size = 0x10000, scoped, tag = 'input window, operand 0']
    #allocation5 [shape = 's32[2]{0}', space=sflag, size = 0x8, scoped, tag = 'scoped memory for tpu_custom_call.1']
    #allocation6 [shape = 's32[2]{0}', space=sflag, size = 0x8, scoped, tag = 'scoped memory for tpu_custom_call.1']
    #allocation7 [shape = 'u8[110592]{0}', space=vmem, size = 0x1b000, scoped, tag = 'input window, operand 1, single buffered']
    #allocation8 [shape = 's32[1]{0}', space=sflag, size = 0x4, scoped, tag = 'scoped memory for tpu_custom_call.1']
    #allocation9 [shape = 'u8[221184]{0}', space=vmem, size = 0x36000, scoped, tag = 'input window, operand 4, single buffered']
    #allocation10 [shape = 'u8[16384]{0}', space=vmem, size = 0x4000, scoped, tag = 'output window, operand 0']
    %12 = vsyncpa [#allocation5], 0
    %s13 = scalar_lea.sflag [#allocation5], 1
    %14 = vsyncpa %s13, 0
    %15 = vsyncpa [#allocation8], 0
    %16 = vsyncpa [#allocation6], 0
    %s17 = scalar_lea.sflag [#allocation6], 1
    %18 = vsyncpa %s17, 0
    loop: start=0, step=1, limit=4
    $region2: #{tpu_custom_call.1} parent=1 // loop_pre_header
      _
    $region3: #{tpu_custom_call.1} parent=1 // loop_header
      %s20 = sphi 0, %s24
      %p21 = scmp.ge.s32.totalorder %s20, 4
      %s30 = sphi 0, %s32
      %s33 = sphi 0, %s30
      %s34 = sphi 0, %s33
      %s50 = sphi 0, %s34
      %s54 = sphi 0, %s54
      %s56 = sphi 0, %s54
      %s57 = sphi 0, %s56
      %s71 = sphi 0, %s57
      %s75 = sphi 0, %s75
      %s77 = sphi 0, %s75
      %s78 = sphi 0, %s77
      %s92 = sphi 0, %s78
      %s96 = sphi 0, %s96
      %s98 = sphi 0, %s96
      %s99 = sphi 0, %s98
      %s113 = sphi 0, %s99
      %s117 = sphi 0, %s117
      %s119 = sphi 0, %s117
      %s120 = sphi 0, %s119
      %s134 = sphi 0, %s120
      %s138 = sphi 0, %s138
      %s140 = sphi 0, %s138
      %s141 = sphi 0, %s140
      %s155 = sphi 0, %s141
      %s159 = sphi 0, %s159
      %s161 = sphi 0, %s159
      %s162 = sphi 0, %s161
      %s176 = sphi 0, %s162
      %s182 = sphi 0, %s184
      %s185 = sphi 0, %s182
      %s186 = sphi 0, %s185
      %s202 = sphi 0, %s186
    $region4: #{tpu_custom_call.1} parent=1 // loop_header_branch
      %23 = sbr.rel (%p21) target = $region8
    $region5: #{tpu_custom_call.1} parent=1 // loop_body
      %s25 = ssub.s32 %s20, 1
      %s26 = ssub.s32 %s20, 2
      %s27 = sadd.s32 %s20, 1
      %s28 = ssub.s32 %s20, %s27
      %p29 = scmp.eq.s32.totalorder %s28, 0
      %s31 = sadd.s32 %s30, 1
      %s32 = scalar_select %p29, %s30, %s31
      %p35 = pneg %p29
      %p36 = scmp.eq.s32.totalorder %s20, 1
      %p37 = por %p35, %p36
      %p38 = scmp.ne.s32.totalorder %s30, %s33
      %p39 = scmp.eq.s32.totalorder %s20, 0
      %p40 = por %p38, %p39
      %p41 = scmp.ne.s32.totalorder %s30, %s33
      %p42 = scmp.eq.s32.totalorder %s25, 1
      %p43 = por %p41, %p42
      %p44 = scmp.ne.s32.totalorder %s33, %s34
      %p45 = scmp.eq.s32.totalorder %s25, 0
      %p46 = por %p44, %p45
      %p47 = scmp.ne.s32.totalorder %s33, %s34
      %p48 = scmp.eq.s32.totalorder %s26, 1
      %p49 = por %p47, %p48
      %p51 = scmp.ne.s32.totalorder %s34, %s50
      %p52 = scmp.eq.s32.totalorder %s26, 0
      %p53 = por %p51, %p52
      %s55 = sadd.s32 %s54, 1
      %p58 = scmp.eq.s32.totalorder %s20, 1
      %p59 = scmp.ne.s32.totalorder %s54, %s56
      %p60 = scmp.eq.s32.totalorder %s20, 0
      %p61 = por %p59, %p60
      %p62 = scmp.ne.s32.totalorder %s54, %s56
      %p63 = scmp.eq.s32.totalorder %s25, 1
      %p64 = por %p62, %p63
      %p65 = scmp.ne.s32.totalorder %s56, %s57
      %p66 = scmp.eq.s32.totalorder %s25, 0
      %p67 = por %p65, %p66
      %p68 = scmp.ne.s32.totalorder %s56, %s57
      %p69 = scmp.eq.s32.totalorder %s26, 1
      %p70 = por %p68, %p69
      %p72 = scmp.ne.s32.totalorder %s57, %s71
      %p73 = scmp.eq.s32.totalorder %s26, 0
      %p74 = por %p72, %p73
      %s76 = sadd.s32 %s75, 1
      %p79 = scmp.eq.s32.totalorder %s20, 1
      %p80 = scmp.ne.s32.totalorder %s75, %s77
      %p81 = scmp.eq.s32.totalorder %s20, 0
      %p82 = por %p80, %p81
      %p83 = scmp.ne.s32.totalorder %s75, %s77
      %p84 = scmp.eq.s32.totalorder %s25, 1
      %p85 = por %p83, %p84
      %p86 = scmp.ne.s32.totalorder %s77, %s78
      %p87 = scmp.eq.s32.totalorder %s25, 0
      %p88 = por %p86, %p87
      %p89 = scmp.ne.s32.totalorder %s77, %s78
      %p90 = scmp.eq.s32.totalorder %s26, 1
      %p91 = por %p89, %p90
      %p93 = scmp.ne.s32.totalorder %s78, %s92
      %p94 = scmp.eq.s32.totalorder %s26, 0
      %p95 = por %p93, %p94
      %s97 = sadd.s32 %s96, 1
      %p100 = scmp.eq.s32.totalorder %s20, 1
      %p101 = scmp.ne.s32.totalorder %s96, %s98
      %p102 = scmp.eq.s32.totalorder %s20, 0
      %p103 = por %p101, %p102
      %p104 = scmp.ne.s32.totalorder %s96, %s98
      %p105 = scmp.eq.s32.totalorder %s25, 1
      %p106 = por %p104, %p105
      %p107 = scmp.ne.s32.totalorder %s98, %s99
      %p108 = scmp.eq.s32.totalorder %s25, 0
      %p109 = por %p107, %p108
      %p110 = scmp.ne.s32.totalorder %s98, %s99
      %p111 = scmp.eq.s32.totalorder %s26, 1
      %p112 = por %p110, %p111
      %p114 = scmp.ne.s32.totalorder %s99, %s113
      %p115 = scmp.eq.s32.totalorder %s26, 0
      %p116 = por %p114, %p115
      %s118 = sadd.s32 %s117, 1
      %p121 = scmp.eq.s32.totalorder %s20, 1
      %p122 = scmp.ne.s32.totalorder %s117, %s119
      %p123 = scmp.eq.s32.totalorder %s20, 0
      %p124 = por %p122, %p123
      %p125 = scmp.ne.s32.totalorder %s117, %s119
      %p126 = scmp.eq.s32.totalorder %s25, 1
      %p127 = por %p125, %p126
      %p128 = scmp.ne.s32.totalorder %s119, %s120
      %p129 = scmp.eq.s32.totalorder %s25, 0
      %p130 = por %p128, %p129
      %p131 = scmp.ne.s32.totalorder %s119, %s120
      %p132 = scmp.eq.s32.totalorder %s26, 1
      %p133 = por %p131, %p132
      %p135 = scmp.ne.s32.totalorder %s120, %s134
      %p136 = scmp.eq.s32.totalorder %s26, 0
      %p137 = por %p135, %p136
      %s139 = sadd.s32 %s138, 1
      %p142 = scmp.eq.s32.totalorder %s20, 1
      %p143 = scmp.ne.s32.totalorder %s138, %s140
      %p144 = scmp.eq.s32.totalorder %s20, 0
      %p145 = por %p143, %p144
      %p146 = scmp.ne.s32.totalorder %s138, %s140
      %p147 = scmp.eq.s32.totalorder %s25, 1
      %p148 = por %p146, %p147
      %p149 = scmp.ne.s32.totalorder %s140, %s141
      %p150 = scmp.eq.s32.totalorder %s25, 0
      %p151 = por %p149, %p150
      %p152 = scmp.ne.s32.totalorder %s140, %s141
      %p153 = scmp.eq.s32.totalorder %s26, 1
      %p154 = por %p152, %p153
      %p156 = scmp.ne.s32.totalorder %s141, %s155
      %p157 = scmp.eq.s32.totalorder %s26, 0
      %p158 = por %p156, %p157
      %s160 = sadd.s32 %s159, 1
      %p163 = scmp.eq.s32.totalorder %s20, 1
      %p164 = scmp.ne.s32.totalorder %s159, %s161
      %p165 = scmp.eq.s32.totalorder %s20, 0
      %p166 = por %p164, %p165
      %p167 = scmp.ne.s32.totalorder %s159, %s161
      %p168 = scmp.eq.s32.totalorder %s25, 1
      %p169 = por %p167, %p168
      %p170 = scmp.ne.s32.totalorder %s161, %s162
      %p171 = scmp.eq.s32.totalorder %s25, 0
      %p172 = por %p170, %p171
      %p173 = scmp.ne.s32.totalorder %s161, %s162
      %p174 = scmp.eq.s32.totalorder %s26, 1
      %p175 = por %p173, %p174
      %p177 = scmp.ne.s32.totalorder %s162, %s176
      %p178 = scmp.eq.s32.totalorder %s26, 0
      %p179 = por %p177, %p178
      %s180 = ssub.s32 %s20, %s27
      %p181 = scmp.eq.s32.totalorder %s180, 0
      %s183 = sadd.s32 %s182, 1
      %s184 = scalar_select %p181, %s182, %s183
      %p187 = pneg %p181
      %p188 = scmp.eq.s32.totalorder %s20, 1
      %p189 = por %p187, %p188
      %p190 = scmp.ne.s32.totalorder %s182, %s185
      %p191 = scmp.eq.s32.totalorder %s20, 0
      %p192 = por %p190, %p191
      %p193 = scmp.ne.s32.totalorder %s182, %s185
      %p194 = scmp.eq.s32.totalorder %s25, 1
      %p195 = por %p193, %p194
      %p196 = scmp.ne.s32.totalorder %s185, %s186
      %p197 = scmp.eq.s32.totalorder %s25, 0
      %p198 = por %p196, %p197
      %p199 = scmp.ne.s32.totalorder %s185, %s186
      %p200 = scmp.eq.s32.totalorder %s26, 1
      %p201 = por %p199, %p200
      %p203 = scmp.ne.s32.totalorder %s186, %s202
      %p204 = scmp.eq.s32.totalorder %s26, 0
      %p205 = por %p203, %p204
      %p206 = scmp.le.s32.totalorder 1, %s20
      %p207 = scmp.lt.s32.totalorder %s20, 3
      %p208 = pnand %p206, %p207
      %p209 = pneg %p208
      // Predicated region
      $region9: #{tpu_custom_call.1} parent=5 // pred_check
        _
      $region10: #{tpu_custom_call.1} parent=5 // pred_check_branch
        %211 = sbr.rel (%p208) target = $region12
      $region11: #{tpu_custom_call.1} parent=5 // pred_region
        %s212 = ssub.s32 %s20, 1
        // Predicated region
        $region13: #{tpu_custom_call.1} parent=11 // pred_check
          %p213 = pneg %p67
        $region14: #{tpu_custom_call.1} parent=11 // pred_check_branch
          %215 = sbr.rel (%p213) target = $region16
        $region15: #{tpu_custom_call.1} parent=11 // pred_region
          %s217 = ssub.s32 3456, 3456
          %218 = vsyncadd [#allocation8], %s217
          %s219 = sshll.u32 [#allocation7], 4
          %s220 = int_to_ptr.vmem [resolvable:$true] %s219
          %225 = dma.hbm_to_vmem [thread:$0]  %s1, 3456, %s220, [#allocation8], 128, 128, 8
        $region16: #{tpu_custom_call.1} parent=11 // pred_fallthru
          _
        // Predicated region
        $region17: #{tpu_custom_call.1} parent=11 // pred_check
          %p226 = pneg %p88
        $region18: #{tpu_custom_call.1} parent=11 // pred_check_branch
          %228 = sbr.rel (%p226) target = $region20
        $region19: #{tpu_custom_call.1} parent=11 // pred_region
          _
        $region20: #{tpu_custom_call.1} parent=11 // pred_fallthru
          _
        // Predicated region
        $region21: #{tpu_custom_call.1} parent=11 // pred_check
          %p229 = pneg %p109
        $region22: #{tpu_custom_call.1} parent=11 // pred_check_branch
          %231 = sbr.rel (%p229) target = $region24
        $region23: #{tpu_custom_call.1} parent=11 // pred_region
          _
        $region24: #{tpu_custom_call.1} parent=11 // pred_fallthru
          _
        // Predicated region
        $region25: #{tpu_custom_call.1} parent=11 // pred_check
          %p232 = pneg %p130
        $region26: #{tpu_custom_call.1} parent=11 // pred_check_branch
          %234 = sbr.rel (%p232) target = $region28
        $region27: #{tpu_custom_call.1} parent=11 // pred_region
          %s236 = ssub.s32 6912, 6912
          %237 = vsyncadd [#allocation8], %s236
          %s238 = sshll.u32 [#allocation9], 4
          %s239 = int_to_ptr.vmem [resolvable:$true] %s238
          %244 = dma.hbm_to_vmem [thread:$0]  %s4, 6912, %s239, [#allocation8], 128, 128, 8
        $region28: #{tpu_custom_call.1} parent=11 // pred_fallthru
          _
        // Predicated region
        $region29: #{tpu_custom_call.1} parent=11 // pred_check
          %p245 = pneg %p151
        $region30: #{tpu_custom_call.1} parent=11 // pred_check_branch
          %247 = sbr.rel (%p245) target = $region32
        $region31: #{tpu_custom_call.1} parent=11 // pred_region
          _
        $region32: #{tpu_custom_call.1} parent=11 // pred_fallthru
          _
        // Predicated region
        $region33: #{tpu_custom_call.1} parent=11 // pred_check
          %p248 = pneg %p172
        $region34: #{tpu_custom_call.1} parent=11 // pred_check_branch
          %250 = sbr.rel (%p248) target = $region36
        $region35: #{tpu_custom_call.1} parent=11 // pred_region
          _
        $region36: #{tpu_custom_call.1} parent=11 // pred_fallthru
          _
      $region12: #{tpu_custom_call.1} parent=5 // pred_fallthru
        _
      %p251 = scmp.lt.s32.totalorder %s20, 2
      // Predicated region
      $region37: #{tpu_custom_call.1} parent=5 // pred_check
        %p252 = pneg %p251
      $region38: #{tpu_custom_call.1} parent=5 // pred_check_branch
        %254 = sbr.rel (%p252) target = $region40
      $region39: #{tpu_custom_call.1} parent=5 // pred_region
        // Predicated region
        $region41: #{tpu_custom_call.1} parent=39 // pred_check
          %p255 = pneg %p40
        $region42: #{tpu_custom_call.1} parent=39 // pred_check_branch
          %257 = sbr.rel (%p255) target = $region44
        $region43: #{tpu_custom_call.1} parent=39 // pred_region
          %s258 = sand.u32 %s30, 1
          %s259 = scalar_lea.sflag [#allocation5], %s258
          %s260 = sand.u32 %s30, 1
          %s261 = smul.addr %s260, 64
          %s262 = scalar_lea.vmem [#allocation4], %s261
          %s264 = ssub.s32 1024, 1024
          %265 = vsyncadd %s259, %s264
          %s266 = smul.addr %s20, 8
          %s267 = smul.addr %s266, 128
          %s268 = scalar_lea.hbm %s0, %s267
          %s269 = sshll.u32 %s262, 4
          %s270 = int_to_ptr.vmem [resolvable:$true] %s269
          %275 = dma.hbm_to_vmem [thread:$0]  %s268, 1024, %s270, %s259, 128, 128, 8
        $region44: #{tpu_custom_call.1} parent=39 // pred_fallthru
          _
      $region40: #{tpu_custom_call.1} parent=5 // pred_fallthru
        _
      %p276 = scmp.le.s32.totalorder 1, %s20
      %p277 = scmp.lt.s32.totalorder %s20, 3
      %p278 = pnand %p276, %p277
      %p279 = pneg %p278
      // Predicated region
      $region45: #{tpu_custom_call.1} parent=5 // pred_check
        _
      $region46: #{tpu_custom_call.1} parent=5 // pred_check_branch
        %281 = sbr.rel (%p278) target = $region48
      $region47: #{tpu_custom_call.1} parent=5 // pred_region
        %s282 = ssub.s32 %s20, 1
        %s283 = sand.u32 %s33, 1
        %s284 = scalar_lea.sflag [#allocation5], %s283
        %s285 = sand.u32 %s33, 1
        %s286 = smul.addr %s285, 64
        %s287 = scalar_lea.vmem [#allocation4], %s286
        // Predicated region
        $region49: #{tpu_custom_call.1} parent=47 // pred_check
          %p288 = pneg %p46
        $region50: #{tpu_custom_call.1} parent=47 // pred_check_branch
          %290 = sbr.rel (%p288) target = $region52
        $region51: #{tpu_custom_call.1} parent=47 // pred_region
          %291 = dma.done %s284, 1024
        $region52: #{tpu_custom_call.1} parent=47 // pred_fallthru
          _
        // Predicated region
        $region53: #{tpu_custom_call.1} parent=47 // pred_check
          %p292 = pneg %p67
        $region54: #{tpu_custom_call.1} parent=47 // pred_check_branch
          %294 = sbr.rel (%p292) target = $region56
        $region55: #{tpu_custom_call.1} parent=47 // pred_region
          %295 = dma.done [#allocation8], 3456
        $region56: #{tpu_custom_call.1} parent=47 // pred_fallthru
          _
        // Predicated region
        $region57: #{tpu_custom_call.1} parent=47 // pred_check
          %p296 = pneg %p130
        $region58: #{tpu_custom_call.1} parent=47 // pred_check_branch
          %298 = sbr.rel (%p296) target = $region60
        $region59: #{tpu_custom_call.1} parent=47 // pred_region
          %299 = dma.done [#allocation8], 6912
        $region60: #{tpu_custom_call.1} parent=47 // pred_fallthru
          _
        %s300 = sand.u32 %s33, 1
        %s301 = scalar_lea.sflag [#allocation5], %s300
        %s302 = sand.u32 %s33, 1
        %s303 = smul.addr %s302, 64
        %s304 = scalar_lea.vmem [#allocation4], %s303
        %p305 = pneg %p46
        %p306 = pneg %p43
        %p307 = pneg %p67
        %p308 = pneg %p64
        %p309 = pneg %p88
        %p310 = pneg %p85
        %p311 = pneg %p109
        %p312 = pneg %p106
        %p313 = pneg %p130
        %p314 = pneg %p127
        %p315 = pneg %p151
        %p316 = pneg %p148
        %p317 = pneg %p172
        %p318 = pneg %p169
        %p319 = pneg %p198
        %p320 = pneg %p195
        %s321 = sand.u32 %s185, 1
        %s322 = scalar_lea.sflag [#allocation6], %s321
        %s323 = sand.u32 %s185, 1
        %s324 = smul.addr %s323, 16
        %s325 = scalar_lea.vmem [#allocation10], %s324
        %vm326 = vcmask 588800
        %327 = vst.msk [vmem:[#allocation2] sm:$0xff] %vm326, 0.0
        %328 = vst.msk [vmem:[#allocation2 + $0x8] sm:$0xff] %vm326, 0.0
        %vm329 = vcmask 582656
        %330 = vst.msk [vmem:[#allocation2 + $0x10] sm:$0x3] %vm329, 0.0
        %v331 = vld [vmem:[%s287] sm:$0xff]
        %v332 = vld [vmem:[%s287 + $0x8] sm:$0xff]
        %335 = vrot.lane.b32.xlu0 %v331, 1
        %v336 = vpop.permute.xlu0 %335
        %337 = vrot.lane.b32.xlu0 %v332, 1
        %v338 = vpop.permute.xlu0 %337
        %vm341 = vcmask 138248
        %342 = vst.msk [vmem:[#allocation2 + $0x1] sm:$0xff] %vm341, %v336
        %343 = vst.msk [vmem:[#allocation2 + $0x9] sm:$0xff] %vm341, %v338
        %s344 = scalar_lea.vmem %s287, 16 [#allocation4]
        %v345 = vld [vmem:[%s344] sm:$0xff]
        %v346 = vld [vmem:[%s344 + $0x8] sm:$0xff]
        %349 = vrot.lane.b32.xlu0 %v345, 19
        %v350 = vpop.permute.xlu0 %349
        %351 = vrot.lane.b32.xlu0 %v346, 19
        %v352 = vpop.permute.xlu0 %351
        %vm355 = vcmask 285848
        %356 = vst.msk [vmem:[#allocation2 + $0x1] sm:$0xff] %vm355, %v350
        %357 = vst.msk [vmem:[#allocation2 + $0x9] sm:$0xff] %vm355, %v352
        %s358 = scalar_lea.vmem %s287, 32 [#allocation4]
        %v359 = vld [vmem:[%s358] sm:$0xff]
        %v360 = vld [vmem:[%s358 + $0x8] sm:$0xff]
        %363 = vrot.lane.b32.xlu0 %v359, 37
        %v364 = vpop.permute.xlu0 %363
        %365 = vrot.lane.b32.xlu0 %v360, 37
        %v366 = vpop.permute.xlu0 %365
        %vm369 = vcmask 433448
        %370 = vst.msk [vmem:[#allocation2 + $0x1] sm:$0xff] %vm369, %v364
        %371 = vst.msk [vmem:[#allocation2 + $0x9] sm:$0xff] %vm369, %v366
        %s372 = scalar_lea.vmem %s287, 48 [#allocation4]
        %v373 = vld [vmem:[%s372] sm:$0xff]
        %v374 = vld [vmem:[%s372 + $0x8] sm:$0xff]
        %377 = vrot.lane.b32.xlu0 %v373, 55
        %v378 = vpop.permute.xlu0 %377
        %379 = vrot.lane.b32.xlu0 %v374, 55
        %v380 = vpop.permute.xlu0 %379
        %vm383 = vcmask 581048
        %384 = vst.msk [vmem:[#allocation2 + $0x1] sm:$0xff] %vm383, %v378
        %385 = vst.msk [vmem:[#allocation2 + $0x9] sm:$0xff] %vm383, %v380
        %v386 = vld [vmem:[#allocation2] sm:$0xff]
        %v387 = vld [vmem:[#allocation2 + $0x8] sm:$0xff]
        %v388 = vld [vmem:[#allocation7] sm:$0xff]
        %v389 = vld [vmem:[#allocation7 + $0x8] sm:$0xff]
        %v390 = vld [vmem:[#allocation7 + $0x10] sm:$0xff]
        %v391 = vld [vmem:[#allocation7 + $0x18] sm:$0xff]
        %v392 = vld [vmem:[#allocation7 + $0x20] sm:$0xff]
        %v393 = vld [vmem:[#allocation7 + $0x28] sm:$0xff]
        %v394 = vld [vmem:[#allocation7 + $0x30] sm:$0xff]
        %v395 = vld [vmem:[#allocation7 + $0x38] sm:$0xff]
        %v396 = vld [vmem:[#allocation7 + $0x40] sm:$0xff]
        %v397 = vld [vmem:[#allocation2 + $0x1] sm:$0xff]
        %v398 = vld [vmem:[#allocation2 + $0x9] sm:$0xff]
        %s399 = scalar_lea.vmem [#allocation7], 72
        %v400 = vld [vmem:[%s399] sm:$0xff]
        %v401 = vld [vmem:[%s399 + $0x8] sm:$0xff]
        %v402 = vld [vmem:[%s399 + $0x10] sm:$0xff]
        %v403 = vld [vmem:[%s399 + $0x18] sm:$0xff]
        %v404 = vld [vmem:[%s399 + $0x20] sm:$0xff]
        %v405 = vld [vmem:[%s399 + $0x28] sm:$0xff]
        %v406 = vld [vmem:[%s399 + $0x30] sm:$0xff]
        %v407 = vld [vmem:[%s399 + $0x38] sm:$0xff]
        %v408 = vld [vmem:[%s399 + $0x40] sm:$0xff]
        %v410 = vsel %vm326, %v397, 0
        %v413 = vsel %vm326, %v398, 0
        %415 = vmatprep.subr.mxu0 0.0
        %416 = vmatpush1.msra.mxu0 0.0
        %417 = vmatprep.subr.mxu0 0.0
        %418 = vmatpush1.msra.mxu0 0.0
        %419 = vmatprep.subr.mxu0 0.0
        %420 = vmatpush1.msra.mxu0 0.0
        %421 = vmatprep.subr.mxu0 0.0
        %422 = vmatpush1.msra.mxu0 0.0
        %423 = vmatprep.subr.mxu0 0.0
        %424 = vmatpush1.msra.mxu0 0.0
        %425 = vmatprep.subr.mxu0 0.0
        %426 = vmatpush1.msra.mxu0 0.0
        %427 = vmatprep.subr.mxu0 0.0
        %428 = vmatpush1.msra.mxu0 0.0
        %429 = vmatprep.subr.mxu0 0.0
        %430 = vmatpush1.msra.mxu0 %v408
        %431 = vmatprep.subr.mxu0 0.0
        %432 = vmatpush1.msra.mxu0 %v407
        %433 = vmatprep.subr.mxu0 0.0
        %434 = vmatpush1.msra.mxu0 %v406
        %435 = vmatprep.subr.mxu0 0.0
        %436 = vmatpush1.msra.mxu0 %v405
        %437 = vmatprep.subr.mxu0 0.0
        %438 = vmatpush1.msra.mxu0 %v404
        %439 = vmatprep.subr.mxu0 0.0
        %440 = vmatpush1.msra.mxu0 %v403
        %441 = vmatprep.subr.mxu0 0.0
        %442 = vmatpush1.msra.mxu0 %v402
        %443 = vmatprep.subr.mxu0 0.0
        %444 = vmatpush1.msra.mxu0 %v401
        %445 = vmatprep.subr.mxu0 0.0
        %446 = vmatpush1.msra.mxu0 %v400
        %447 = vmatprep.subr.mxu0 0.0
        %448 = vmatpush2.msra.mxu0 0.0
        %449 = vmatprep.subr.mxu0 0.0
        %450 = vmatpush2.msra.mxu0 0.0
        %451 = vmatprep.subr.mxu0 0.0
        %452 = vmatpush2.msra.mxu0 0.0
        %453 = vmatprep.subr.mxu0 0.0
        %454 = vmatpush2.msra.mxu0 0.0
        %455 = vmatprep.subr.mxu0 0.0
        %456 = vmatpush2.msra.mxu0 0.0
        %457 = vmatprep.subr.mxu0 0.0
        %458 = vmatpush2.msra.mxu0 0.0
        %459 = vmatprep.subr.mxu0 0.0
        %460 = vmatpush2.msra.mxu0 0.0
        %461 = vmatprep.subr.mxu0 0.0
        %462 = vmatpush2.msra.mxu0 0.0
        %463 = vmatprep.subr.mxu0 0.0
        %464 = vmatpush2.msra.mxu0 0.0
        %465 = vmatprep.subr.mxu0 0.0
        %466 = vmatpush2.msra.mxu0 0.0
        %467 = vmatprep.subr.mxu0 0.0
        %468 = vmatpush2.msra.mxu0 0.0
        %469 = vmatprep.subr.mxu0 0.0
        %470 = vmatpush2.msra.mxu0 0.0
        %471 = vmatprep.subr.mxu0 0.0
        %472 = vmatpush2.msra.mxu0 0.0
        %473 = vmatprep.subr.mxu0 0.0
        %474 = vmatpush2.msra.mxu0 0.0
        %475 = vmatprep.subr.mxu0 0.0
        %476 = vmatpush2.msra.mxu0 0.0
        %477 = vmatprep.subr.mxu0 0.0
        %478 = vmatpush2.msra.mxu0 0.0
        %479 = vmatprep.mubr.f32.mxu0 0.0
        %480 = vmatmul.mubr.f32.gmra.mxu0 %v410
        %v481 = vpop.f32.mrf.mxu0
        %v482 = vadd.f32 0.0, %v481
        %v483 = vpop.f32.mrf.mxu0
        %484 = vmatprep.mubr.f32.mxu0 0.0
        %485 = vmatmul.mubr.f32.gmra.mxu0 %v413
        %v486 = vpop.f32.mrf.mxu0
        %v487 = vadd.f32 0.0, %v486
        %v488 = vpop.f32.mrf.mxu0
        %489 = vdwg.mxu0
        %v491 = vsel %vm326, %v386, 0
        %v494 = vsel %vm326, %v387, 0
        %496 = vmatprep.subr.mxu0 0.0
        %497 = vmatpush1.msra.mxu0 0.0
        %498 = vmatprep.subr.mxu0 0.0
        %499 = vmatpush1.msra.mxu0 0.0
        %500 = vmatprep.subr.mxu0 0.0
        %501 = vmatpush1.msra.mxu0 0.0
        %502 = vmatprep.subr.mxu0 0.0
        %503 = vmatpush1.msra.mxu0 0.0
        %504 = vmatprep.subr.mxu0 0.0
        %505 = vmatpush1.msra.mxu0 0.0
        %506 = vmatprep.subr.mxu0 0.0
        %507 = vmatpush1.msra.mxu0 0.0
        %508 = vmatprep.subr.mxu0 0.0
        %509 = vmatpush1.msra.mxu0 0.0
        %510 = vmatprep.subr.mxu0 0.0
        %511 = vmatpush1.msra.mxu0 %v396
        %512 = vmatprep.subr.mxu0 0.0
        %513 = vmatpush1.msra.mxu0 %v395
        %514 = vmatprep.subr.mxu0 0.0
        %515 = vmatpush1.msra.mxu0 %v394
        %516 = vmatprep.subr.mxu0 0.0
        %517 = vmatpush1.msra.mxu0 %v393
        %518 = vmatprep.subr.mxu0 0.0
        %519 = vmatpush1.msra.mxu0 %v392
        %520 = vmatprep.subr.mxu0 0.0
        %521 = vmatpush1.msra.mxu0 %v391
        %522 = vmatprep.subr.mxu0 0.0
        %523 = vmatpush1.msra.mxu0 %v390
        %524 = vmatprep.subr.mxu0 0.0
        %525 = vmatpush1.msra.mxu0 %v389
        %526 = vmatprep.subr.mxu0 0.0
        %527 = vmatpush1.msra.mxu0 %v388
        %528 = vmatprep.subr.mxu0 0.0
        %529 = vmatpush2.msra.mxu0 0.0
        %530 = vmatprep.subr.mxu0 0.0
        %531 = vmatpush2.msra.mxu0 0.0
        %532 = vmatprep.subr.mxu0 0.0
        %533 = vmatpush2.msra.mxu0 0.0
        %534 = vmatprep.subr.mxu0 0.0
        %535 = vmatpush2.msra.mxu0 0.0
        %536 = vmatprep.subr.mxu0 0.0
        %537 = vmatpush2.msra.mxu0 0.0
        %538 = vmatprep.subr.mxu0 0.0
        %539 = vmatpush2.msra.mxu0 0.0
        %540 = vmatprep.subr.mxu0 0.0
        %541 = vmatpush2.msra.mxu0 0.0
        %542 = vmatprep.subr.mxu0 0.0
        %543 = vmatpush2.msra.mxu0 0.0
        %544 = vmatprep.subr.mxu0 0.0
        %545 = vmatpush2.msra.mxu0 0.0
        %546 = vmatprep.subr.mxu0 0.0
        %547 = vmatpush2.msra.mxu0 0.0
        %548 = vmatprep.subr.mxu0 0.0
        %549 = vmatpush2.msra.mxu0 0.0
        %550 = vmatprep.subr.mxu0 0.0
        %551 = vmatpush2.msra.mxu0 0.0
        %552 = vmatprep.subr.mxu0 0.0
        %553 = vmatpush2.msra.mxu0 0.0
        %554 = vmatprep.subr.mxu0 0.0
        %555 = vmatpush2.msra.mxu0 0.0
        %556 = vmatprep.subr.mxu0 0.0
        %557 = vmatpush2.msra.mxu0 0.0
        %558 = vmatprep.subr.mxu0 0.0
        %559 = vmatpush2.msra.mxu0 0.0
        %560 = vmatprep.mubr.f32.mxu0 0.0
        %561 = vmatmul.mubr.f32.gmra.mxu0 %v491
        %v562 = vpop.f32.mrf.mxu0
        %v563 = vadd.f32 %v482, %v562
        %v564 = vpop.f32.mrf.mxu0
        %565 = vmatprep.mubr.f32.mxu0 0.0
        %566 = vmatmul.mubr.f32.gmra.mxu0 %v494
        %v567 = vpop.f32.mrf.mxu0
        %v568 = vadd.f32 %v487, %v567
        %v569 = vpop.f32.mrf.mxu0
        %570 = vdwg.mxu0
        %v571 = vld [vmem:[#allocation2 + $0x2] sm:$0xff]
        %v572 = vld [vmem:[#allocation2 + $0xa] sm:$0xff]
        %s573 = scalar_lea.vmem [#allocation7], 144
        %v574 = vld [vmem:[%s573] sm:$0xff]
        %v575 = vld [vmem:[%s573 + $0x8] sm:$0xff]
        %v576 = vld [vmem:[%s573 + $0x10] sm:$0xff]
        %v577 = vld [vmem:[%s573 + $0x18] sm:$0xff]
        %v578 = vld [vmem:[%s573 + $0x20] sm:$0xff]
        %v579 = vld [vmem:[%s573 + $0x28] sm:$0xff]
        %v580 = vld [vmem:[%s573 + $0x30] sm:$0xff]
        %v581 = vld [vmem:[%s573 + $0x38] sm:$0xff]
        %v582 = vld [vmem:[%s573 + $0x40] sm:$0xff]
        %v584 = vsel %vm326, %v571, 0
        %v587 = vsel %vm326, %v572, 0
        %589 = vmatprep.subr.mxu0 0.0
        %590 = vmatpush1.msra.mxu0 0.0
        %591 = vmatprep.subr.mxu0 0.0
        %592 = vmatpush1.msra.mxu0 0.0
        %593 = vmatprep.subr.mxu0 0.0
        %594 = vmatpush1.msra.mxu0 0.0
        %595 = vmatprep.subr.mxu0 0.0
        %596 = vmatpush1.msra.mxu0 0.0
        %597 = vmatprep.subr.mxu0 0.0
        %598 = vmatpush1.msra.mxu0 0.0
        %599 = vmatprep.subr.mxu0 0.0
        %600 = vmatpush1.msra.mxu0 0.0
        %601 = vmatprep.subr.mxu0 0.0
        %602 = vmatpush1.msra.mxu0 0.0
        %603 = vmatprep.subr.mxu0 0.0
        %604 = vmatpush1.msra.mxu0 %v582
        %605 = vmatprep.subr.mxu0 0.0
        %606 = vmatpush1.msra.mxu0 %v581
        %607 = vmatprep.subr.mxu0 0.0
        %608 = vmatpush1.msra.mxu0 %v580
        %609 = vmatprep.subr.mxu0 0.0
        %610 = vmatpush1.msra.mxu0 %v579
        %611 = vmatprep.subr.mxu0 0.0
        %612 = vmatpush1.msra.mxu0 %v578
        %613 = vmatprep.subr.mxu0 0.0
        %614 = vmatpush1.msra.mxu0 %v577
        %615 = vmatprep.subr.mxu0 0.0
        %616 = vmatpush1.msra.mxu0 %v576
        %617 = vmatprep.subr.mxu0 0.0
        %618 = vmatpush1.msra.mxu0 %v575
        %619 = vmatprep.subr.mxu0 0.0
        %620 = vmatpush1.msra.mxu0 %v574
        %621 = vmatprep.subr.mxu0 0.0
        %622 = vmatpush2.msra.mxu0 0.0
        %623 = vmatprep.subr.mxu0 0.0
        %624 = vmatpush2.msra.mxu0 0.0
        %625 = vmatprep.subr.mxu0 0.0
        %626 = vmatpush2.msra.mxu0 0.0
        %627 = vmatprep.subr.mxu0 0.0
        %628 = vmatpush2.msra.mxu0 0.0
        %629 = vmatprep.subr.mxu0 0.0
        %630 = vmatpush2.msra.mxu0 0.0
        %631 = vmatprep.subr.mxu0 0.0
        %632 = vmatpush2.msra.mxu0 0.0
        %633 = vmatprep.subr.mxu0 0.0
        %634 = vmatpush2.msra.mxu0 0.0
        %635 = vmatprep.subr.mxu0 0.0
        %636 = vmatpush2.msra.mxu0 0.0
        %637 = vmatprep.subr.mxu0 0.0
        %638 = vmatpush2.msra.mxu0 0.0
        %639 = vmatprep.subr.mxu0 0.0
        %640 = vmatpush2.msra.mxu0 0.0
        %641 = vmatprep.subr.mxu0 0.0
        %642 = vmatpush2.msra.mxu0 0.0
        %643 = vmatprep.subr.mxu0 0.0
        %644 = vmatpush2.msra.mxu0 0.0
        %645 = vmatprep.subr.mxu0 0.0
        %646 = vmatpush2.msra.mxu0 0.0
        %647 = vmatprep.subr.mxu0 0.0
        %648 = vmatpush2.msra.mxu0 0.0
        %649 = vmatprep.subr.mxu0 0.0
        %650 = vmatpush2.msra.mxu0 0.0
        %651 = vmatprep.subr.mxu0 0.0
        %652 = vmatpush2.msra.mxu0 0.0
        %653 = vmatprep.mubr.f32.mxu0 0.0
        %654 = vmatmul.mubr.f32.gmra.mxu0 %v584
        %v655 = vpop.f32.mrf.mxu0
        %v656 = vadd.f32 0.0, %v655
        %v657 = vpop.f32.mrf.mxu0
        %658 = vmatprep.mubr.f32.mxu0 0.0
        %659 = vmatmul.mubr.f32.gmra.mxu0 %v587
        %v660 = vpop.f32.mrf.mxu0
        %v661 = vadd.f32 0.0, %v660
        %v662 = vpop.f32.mrf.mxu0
        %663 = vdwg.mxu0
        %v664 = vadd.f32 %v563, %v656
        %v665 = vadd.f32 %v568, %v661
        %v666 = vld [vmem:[%s2] sm:$0x1]
        %v667 = vld [vmem:[%s3] sm:$0x1]
        %v668 = vadd.f32 %v664, %v665
        %669 = vadd.xlane.f32.xlu0 %v668
        %v670 = vpop.xlane.xlu0 %669
        %v671 = vrot.slane %v670, 4
        %v672 = vadd.f32 %v670, %v671
        %v673 = vrot.slane %v672, 2
        %v674 = vadd.f32 %v672, %v673
        %v675 = vrot.slane %v674, 1
        %v676 = vadd.f32 %v674, %v675
        %s677 = vtos %v676
        %s678 = smul.f32 %s677, 0.00048828125
        %v679 = vmul.f32 %v664, %v664
        %v680 = vmul.f32 %v665, %v665
        %v681 = vadd.f32 %v679, %v680
        %682 = vadd.xlane.f32.xlu0 %v681
        %v683 = vpop.xlane.xlu0 %682
        %v684 = vrot.slane %v683, 4
        %v685 = vadd.f32 %v683, %v684
        %v686 = vrot.slane %v685, 2
        %v687 = vadd.f32 %v685, %v686
        %v688 = vrot.slane %v687, 1
        %v689 = vadd.f32 %v687, %v688
        %s690 = vtos %v689
        %s691 = smul.f32 %s690, 0.00048828125
        %s692 = smul.f32 %s678, %s678
        %s693 = ssub.f32 %s691, %s692
        %v694 = vstv %s678
        %v695 = vsub.f32 %v664, %v694
        %v696 = vsub.f32 %v665, %v694
        %s697 = sadd.f32 %s693, 1e-05
        %v698 = vstv %s697
        %v699 = vrsqrt.pop %v698
        %s700 = vtos %v699
        %v701 = vstv %s700
        %v702 = vmul.f32 %v695, %v701
        %v703 = vmul.f32 %v696, %v701
        %v705 = vlaneseq
        %v706 = vshrl.u32 %v705, 7
        %v707 = vsub.s32 0, %v706
        %v708 = vrot.slane %v666, %v707
        %v710 = vmul.f32 %v702, %v708
        %v711 = vmul.f32 %v703, %v708
        %v713 = vlaneseq
        %v714 = vshrl.u32 %v713, 7
        %v715 = vsub.s32 0, %v714
        %v716 = vrot.slane %v667, %v715
        %v718 = vadd.f32 %v710, %v716
        %v719 = vadd.f32 %v711, %v716
        %v720 = vmul.f32 %v718, 0.5
        %v721 = vmul.f32 %v719, 0.5
        %v722 = vmul.f32 %v718, 0.044715
        %v723 = vmul.f32 %v719, 0.044715
        %v724 = vmul.f32 %v722, %v718
        %v725 = vmul.f32 %v723, %v719
        %v726 = vmul.f32 %v724, %v718
        %v727 = vmul.f32 %v725, %v719
        %v728 = vadd.f32 %v718, %v726
        %v729 = vadd.f32 %v719, %v727
        %v730 = vmul.f32 %v728, 0.7978846
        %v731 = vmul.f32 %v729, 0.7978846
        %v732 = vtanh.pop %v730
        %v733 = vtanh.pop %v731
        %v734 = vadd.f32 %v732, 1.0
        %v735 = vadd.f32 %v733, 1.0
        %v736 = vmul.f32 %v720, %v734
        %v737 = vmul.f32 %v721, %v735
        %738 = vst [vmem:[#allocation3] sm:$0xff] 0.0
        %vm739 = vcmask 130048
        %740 = vst.msk [vmem:[#allocation3 + $0x8] sm:$0xff] %vm739, 0.0
        %741 = vst [vmem:[#allocation3 + $0x10] sm:$0xff] 0.0
        %742 = vst.msk [vmem:[#allocation3 + $0x18] sm:$0xff] %vm739, 0.0
        %743 = vst [vmem:[#allocation3 + $0x20] sm:$0x3] 0.0
        %vm744 = vcmask 123904
        %745 = vst.msk [vmem:[#allocation3 + $0x28] sm:$0x3] %vm744, 0.0
        %vm748 = vcmask 1040384
        %v749 = vrot.slane %v736, 7
        %v750 = vrot.slane %v737, 7
        %v751 = vsel %vm748, %v749, %v750
        %752 = vrot.lane.b32.xlu0 %v749, 1
        %v753 = vpop.permute.xlu0 %752
        %754 = vrot.lane.b32.xlu0 %v751, 1
        %v755 = vpop.permute.xlu0 %754
        %756 = vrot.lane.b32.xlu0 %v750, 1
        %v757 = vpop.permute.xlu0 %756
        %vm761 = vcmask 138249
        %762 = vst.msk [vmem:[#allocation3] sm:$0xfe] %vm761, %v753
        %763 = vst.msk [vmem:[#allocation3 + $0x10] sm:$0xff] %vm341, %v755
        %vm764 = vcmask 131080
        %765 = vst.msk [vmem:[#allocation3 + $0x20] sm:$0x1] %vm764, %v757
        %766 = vrot.lane.b32.xlu0 %v749, 3
        %v767 = vpop.permute.xlu0 %766
        %768 = vrot.lane.b32.xlu0 %v751, 3
        %v769 = vpop.permute.xlu0 %768
        %770 = vrot.lane.b32.xlu0 %v750, 3
        %v771 = vpop.permute.xlu0 %770
        %vm775 = vcmask 285849
        %776 = vst.msk [vmem:[#allocation3] sm:$0xfe] %vm775, %v767
        %777 = vst.msk [vmem:[#allocation3 + $0x10] sm:$0xff] %vm355, %v769
        %vm778 = vcmask 278680
        %779 = vst.msk [vmem:[#allocation3 + $0x20] sm:$0x1] %vm778, %v771
        %780 = vrot.lane.b32.xlu0 %v749, 5
        %v781 = vpop.permute.xlu0 %780
        %782 = vrot.lane.b32.xlu0 %v751, 5
        %v783 = vpop.permute.xlu0 %782
        %784 = vrot.lane.b32.xlu0 %v750, 5
        %v785 = vpop.permute.xlu0 %784
        %vm789 = vcmask 433449
        %790 = vst.msk [vmem:[#allocation3] sm:$0xfe] %vm789, %v781
        %791 = vst.msk [vmem:[#allocation3 + $0x10] sm:$0xff] %vm369, %v783
        %vm792 = vcmask 426280
        %793 = vst.msk [vmem:[#allocation3 + $0x20] sm:$0x1] %vm792, %v785
        %794 = vrot.lane.b32.xlu0 %v749, 7
        %v795 = vpop.permute.xlu0 %794
        %796 = vrot.lane.b32.xlu0 %v751, 7
        %v797 = vpop.permute.xlu0 %796
        %798 = vrot.lane.b32.xlu0 %v750, 7
        %v799 = vpop.permute.xlu0 %798
        %vm803 = vcmask 581049
        %804 = vst.msk [vmem:[#allocation3] sm:$0xfe] %vm803, %v795
        %805 = vst.msk [vmem:[#allocation3 + $0x10] sm:$0xff] %vm383, %v797
        %vm806 = vcmask 573880
        %807 = vst.msk [vmem:[#allocation3 + $0x20] sm:$0x1] %vm806, %v799
        %808 = vrot.lane.b32.xlu0 %v749, 9
        %v809 = vpop.permute.xlu0 %808
        %810 = vrot.lane.b32.xlu0 %v751, 9
        %v811 = vpop.permute.xlu0 %810
        %812 = vrot.lane.b32.xlu0 %v750, 9
        %v813 = vpop.permute.xlu0 %812
        %vm817 = vcmask 728649
        %818 = vst.msk [vmem:[#allocation3] sm:$0xfe] %vm817, %v809
        %vm819 = vcmask 728648
        %820 = vst.msk [vmem:[#allocation3 + $0x10] sm:$0xff] %vm819, %v811
        %vm821 = vcmask 721480
        %822 = vst.msk [vmem:[#allocation3 + $0x20] sm:$0x1] %vm821, %v813
        %823 = vrot.lane.b32.xlu0 %v749, 11
        %v824 = vpop.permute.xlu0 %823
        %825 = vrot.lane.b32.xlu0 %v751, 11
        %v826 = vpop.permute.xlu0 %825
        %827 = vrot.lane.b32.xlu0 %v750, 11
        %v828 = vpop.permute.xlu0 %827
        %vm832 = vcmask 876249
        %833 = vst.msk [vmem:[#allocation3] sm:$0xfe] %vm832, %v824
        %vm834 = vcmask 876248
        %835 = vst.msk [vmem:[#allocation3 + $0x10] sm:$0xff] %vm834, %v826
        %vm836 = vcmask 869080
        %837 = vst.msk [vmem:[#allocation3 + $0x20] sm:$0x1] %vm836, %v828
        %838 = vrot.lane.b32.xlu0 %v749, 13
        %v839 = vpop.permute.xlu0 %838
        %840 = vrot.lane.b32.xlu0 %v751, 13
        %v841 = vpop.permute.xlu0 %840
        %842 = vrot.lane.b32.xlu0 %v750, 13
        %v843 = vpop.permute.xlu0 %842
        %vm847 = vcmask 1023849
        %848 = vst.msk [vmem:[#allocation3] sm:$0xfe] %vm847, %v839
        %vm849 = vcmask 1023848
        %850 = vst.msk [vmem:[#allocation3 + $0x10] sm:$0xff] %vm849, %v841
        %vm851 = vcmask 1016680
        %852 = vst.msk [vmem:[#allocation3 + $0x20] sm:$0x1] %vm851, %v843
        %853 = vrot.lane.b32.xlu0 %v749, 15
        %v854 = vpop.permute.xlu0 %853
        %855 = vrot.lane.b32.xlu0 %v751, 15
        %v856 = vpop.permute.xlu0 %855
        %857 = vrot.lane.b32.xlu0 %v750, 15
        %v858 = vpop.permute.xlu0 %857
        %vm862 = vcmask 1048569
        %863 = vst.msk [vmem:[#allocation3] sm:$0xfe] %vm862, %v854
        %vm864 = vcmask 121857
        %865 = vst.msk [vmem:[#allocation3 + $0x8] sm:$0xfe] %vm864, %v854
        %vm866 = vcmask 1048568
        %867 = vst.msk [vmem:[#allocation3 + $0x10] sm:$0xff] %vm866, %v856
        %vm868 = vcmask 121856
        %869 = vst.msk [vmem:[#allocation3 + $0x18] sm:$0xff] %vm868, %v856
        %vm870 = vcmask 1041400
        %871 = vst.msk [vmem:[#allocation3 + $0x20] sm:$0x1] %vm870, %v858
        %vm872 = vcmask 114688
        %873 = vst.msk [vmem:[#allocation3 + $0x28] sm:$0x1] %vm872, %v858
        %v874 = vld [vmem:[#allocation3] sm:$0xff]
        %v875 = vld [vmem:[#allocation3 + $0x8] sm:$0xff]
        %v876 = vld [vmem:[#allocation3 + $0x10] sm:$0xff]
        %v877 = vld [vmem:[#allocation3 + $0x18] sm:$0xff]
        %v878 = vld [vmem:[#allocation9] sm:$0xff]
        %v879 = vld [vmem:[#allocation9 + $0x8] sm:$0xff]
        %v880 = vld [vmem:[#allocation9 + $0x10] sm:$0xff]
        %v881 = vld [vmem:[#allocation9 + $0x18] sm:$0xff]
        %v882 = vld [vmem:[#allocation9 + $0x20] sm:$0xff]
        %v883 = vld [vmem:[#allocation9 + $0x28] sm:$0xff]
        %v884 = vld [vmem:[#allocation9 + $0x30] sm:$0xff]
        %v885 = vld [vmem:[#allocation9 + $0x38] sm:$0xff]
        %v886 = vld [vmem:[#allocation9 + $0x40] sm:$0xff]
        %v887 = vld [vmem:[#allocation9 + $0x48] sm:$0xff]
        %v888 = vld [vmem:[#allocation9 + $0x50] sm:$0xff]
        %v889 = vld [vmem:[#allocation9 + $0x58] sm:$0xff]
        %v890 = vld [vmem:[#allocation9 + $0x60] sm:$0xff]
        %v891 = vld [vmem:[#allocation9 + $0x68] sm:$0xff]
        %v892 = vld [vmem:[#allocation9 + $0x70] sm:$0xff]
        %v893 = vld [vmem:[#allocation9 + $0x78] sm:$0xff]
        %v894 = vld [vmem:[#allocation9 + $0x80] sm:$0xff]
        %v895 = vld [vmem:[#allocation9 + $0x88] sm:$0xff]
        %v896 = vld [vmem:[#allocation3] sm:$0xfe]
        %v897 = vld [vmem:[#allocation3 + $0x8] sm:$0xfe]
        %v898 = vld [vmem:[#allocation3 + $0x20] sm:$0x1]
        %v899 = vld [vmem:[#allocation3 + $0x28] sm:$0x1]
        %s900 = scalar_lea.vmem [#allocation9], 144
        %v901 = vld [vmem:[%s900] sm:$0xff]
        %v902 = vld [vmem:[%s900 + $0x8] sm:$0xff]
        %v903 = vld [vmem:[%s900 + $0x10] sm:$0xff]
        %v904 = vld [vmem:[%s900 + $0x18] sm:$0xff]
        %v905 = vld [vmem:[%s900 + $0x20] sm:$0xff]
        %v906 = vld [vmem:[%s900 + $0x28] sm:$0xff]
        %v907 = vld [vmem:[%s900 + $0x30] sm:$0xff]
        %v908 = vld [vmem:[%s900 + $0x38] sm:$0xff]
        %v909 = vld [vmem:[%s900 + $0x40] sm:$0xff]
        %v910 = vld [vmem:[%s900 + $0x48] sm:$0xff]
        %v911 = vld [vmem:[%s900 + $0x50] sm:$0xff]
        %v912 = vld [vmem:[%s900 + $0x58] sm:$0xff]
        %v913 = vld [vmem:[%s900 + $0x60] sm:$0xff]
        %v914 = vld [vmem:[%s900 + $0x68] sm:$0xff]
        %v915 = vld [vmem:[%s900 + $0x70] sm:$0xff]
        %v916 = vld [vmem:[%s900 + $0x78] sm:$0xff]
        %v917 = vld [vmem:[%s900 + $0x80] sm:$0xff]
        %v918 = vld [vmem:[%s900 + $0x88] sm:$0xff]
        %vm925 = vcmask 1046528
        %v926 = vrot.slane %v896, 1
        %v927 = vrot.slane %v876, 1
        %v928 = vsel %vm925, %v926, %v927
        %v929 = vrot.slane %v897, 1
        %v930 = vrot.slane %v877, 1
        %v931 = vsel %vm925, %v929, %v930
        %v932 = vrot.slane %v898, 1
        %v933 = vsel %vm925, %v927, %v932
        %v934 = vrot.slane %v899, 1
        %v935 = vsel %vm925, %v930, %v934
        %v938 = vsel %vm739, %v931, 0
        %v940 = vsel %vm739, %v935, 0
        %942 = vmatprep.subr.mxu0 0.0
        %943 = vmatpush1.msra.mxu0 %v916
        %944 = vmatprep.subr.mxu0 0.0
        %945 = vmatpush1.msra.mxu0 %v915
        %946 = vmatprep.subr.mxu0 0.0
        %947 = vmatpush1.msra.mxu0 %v914
        %948 = vmatprep.subr.mxu0 0.0
        %949 = vmatpush1.msra.mxu0 %v913
        %950 = vmatprep.subr.mxu0 0.0
        %951 = vmatpush1.msra.mxu0 %v912
        %952 = vmatprep.subr.mxu0 0.0
        %953 = vmatpush1.msra.mxu0 %v911
        %954 = vmatprep.subr.mxu0 0.0
        %955 = vmatpush1.msra.mxu0 %v910
        %956 = vmatprep.subr.mxu0 0.0
        %957 = vmatpush1.msra.mxu0 %v909
        %958 = vmatprep.subr.mxu0 0.0
        %959 = vmatpush1.msra.mxu0 %v908
        %960 = vmatprep.subr.mxu0 0.0
        %961 = vmatpush1.msra.mxu0 %v907
        %962 = vmatprep.subr.mxu0 0.0
        %963 = vmatpush1.msra.mxu0 %v906
        %964 = vmatprep.subr.mxu0 0.0
        %965 = vmatpush1.msra.mxu0 %v905
        %966 = vmatprep.subr.mxu0 0.0
        %967 = vmatpush1.msra.mxu0 %v904
        %968 = vmatprep.subr.mxu0 0.0
        %969 = vmatpush1.msra.mxu0 %v903
        %970 = vmatprep.subr.mxu0 0.0
        %971 = vmatpush1.msra.mxu0 %v902
        %972 = vmatprep.subr.mxu0 0.0
        %973 = vmatpush1.msra.mxu0 %v901
        %974 = vmatprep.subr.mxu0 0.0
        %975 = vmatpush2.msra.mxu0 0.0
        %976 = vmatprep.subr.mxu0 0.0
        %977 = vmatpush2.msra.mxu0 0.0
        %978 = vmatprep.subr.mxu0 0.0
        %979 = vmatpush2.msra.mxu0 0.0
        %980 = vmatprep.subr.mxu0 0.0
        %981 = vmatpush2.msra.mxu0 0.0
        %982 = vmatprep.subr.mxu0 0.0
        %983 = vmatpush2.msra.mxu0 0.0
        %984 = vmatprep.subr.mxu0 0.0
        %985 = vmatpush2.msra.mxu0 0.0
        %986 = vmatprep.subr.mxu0 0.0
        %987 = vmatpush2.msra.mxu0 0.0
        %988 = vmatprep.subr.mxu0 0.0
        %989 = vmatpush2.msra.mxu0 0.0
        %990 = vmatprep.subr.mxu0 0.0
        %991 = vmatpush2.msra.mxu0 0.0
        %992 = vmatprep.subr.mxu0 0.0
        %993 = vmatpush2.msra.mxu0 0.0
        %994 = vmatprep.subr.mxu0 0.0
        %995 = vmatpush2.msra.mxu0 0.0
        %996 = vmatprep.subr.mxu0 0.0
        %997 = vmatpush2.msra.mxu0 0.0
        %998 = vmatprep.subr.mxu0 0.0
        %999 = vmatpush2.msra.mxu0 0.0
        %1000 = vmatprep.subr.mxu0 0.0
        %1001 = vmatpush2.msra.mxu0 0.0
        %1002 = vmatprep.subr.mxu0 0.0
        %1003 = vmatpush2.msra.mxu0 %v918
        %1004 = vmatprep.subr.mxu0 0.0
        %1005 = vmatpush2.msra.mxu0 %v917
        %1006 = vmatprep.mubr.f32.mxu0 %v938
        %1007 = vmatmul.mubr.f32.gmra.mxu0 %v928
        %v1008 = vpop.f32.mrf.mxu0
        %v1009 = vadd.f32 0.0, %v1008
        %v1010 = vpop.f32.mrf.mxu0
        %1011 = vmatprep.mubr.f32.mxu0 %v940
        %1012 = vmatmul.mubr.f32.gmra.mxu0 %v933
        %v1013 = vpop.f32.mrf.mxu0
        %v1014 = vadd.f32 0.0, %v1013
        %v1015 = vpop.f32.mrf.mxu0
        %1016 = vdwg.mxu0
        %v1018 = vsel %vm739, %v875, 0
        %v1020 = vsel %vm739, %v877, 0
        %1022 = vmatprep.subr.mxu0 0.0
        %1023 = vmatpush1.msra.mxu0 %v893
        %1024 = vmatprep.subr.mxu0 0.0
        %1025 = vmatpush1.msra.mxu0 %v892
        %1026 = vmatprep.subr.mxu0 0.0
        %1027 = vmatpush1.msra.mxu0 %v891
        %1028 = vmatprep.subr.mxu0 0.0
        %1029 = vmatpush1.msra.mxu0 %v890
        %1030 = vmatprep.subr.mxu0 0.0
        %1031 = vmatpush1.msra.mxu0 %v889
        %1032 = vmatprep.subr.mxu0 0.0
        %1033 = vmatpush1.msra.mxu0 %v888
        %1034 = vmatprep.subr.mxu0 0.0
        %1035 = vmatpush1.msra.mxu0 %v887
        %1036 = vmatprep.subr.mxu0 0.0
        %1037 = vmatpush1.msra.mxu0 %v886
        %1038 = vmatprep.subr.mxu0 0.0
        %1039 = vmatpush1.msra.mxu0 %v885
        %1040 = vmatprep.subr.mxu0 0.0
        %1041 = vmatpush1.msra.mxu0 %v884
        %1042 = vmatprep.subr.mxu0 0.0
        %1043 = vmatpush1.msra.mxu0 %v883
        %1044 = vmatprep.subr.mxu0 0.0
        %1045 = vmatpush1.msra.mxu0 %v882
        %1046 = vmatprep.subr.mxu0 0.0
        %1047 = vmatpush1.msra.mxu0 %v881
        %1048 = vmatprep.subr.mxu0 0.0
        %1049 = vmatpush1.msra.mxu0 %v880
        %1050 = vmatprep.subr.mxu0 0.0
        %1051 = vmatpush1.msra.mxu0 %v879
        %1052 = vmatprep.subr.mxu0 0.0
        %1053 = vmatpush1.msra.mxu0 %v878
        %1054 = vmatprep.subr.mxu0 0.0
        %1055 = vmatpush2.msra.mxu0 0.0
        %1056 = vmatprep.subr.mxu0 0.0
        %1057 = vmatpush2.msra.mxu0 0.0
        %1058 = vmatprep.subr.mxu0 0.0
        %1059 = vmatpush2.msra.mxu0 0.0
        %1060 = vmatprep.subr.mxu0 0.0
        %1061 = vmatpush2.msra.mxu0 0.0
        %1062 = vmatprep.subr.mxu0 0.0
        %1063 = vmatpush2.msra.mxu0 0.0
        %1064 = vmatprep.subr.mxu0 0.0
        %1065 = vmatpush2.msra.mxu0 0.0
        %1066 = vmatprep.subr.mxu0 0.0
        %1067 = vmatpush2.msra.mxu0 0.0
        %1068 = vmatprep.subr.mxu0 0.0
        %1069 = vmatpush2.msra.mxu0 0.0
        %1070 = vmatprep.subr.mxu0 0.0
        %1071 = vmatpush2.msra.mxu0 0.0
        %1072 = vmatprep.subr.mxu0 0.0
        %1073 = vmatpush2.msra.mxu0 0.0
        %1074 = vmatprep.subr.mxu0 0.0
        %1075 = vmatpush2.msra.mxu0 0.0
        %1076 = vmatprep.subr.mxu0 0.0
        %1077 = vmatpush2.msra.mxu0 0.0
        %1078 = vmatprep.subr.mxu0 0.0
        %1079 = vmatpush2.msra.mxu0 0.0
        %1080 = vmatprep.subr.mxu0 0.0
        %1081 = vmatpush2.msra.mxu0 0.0
        %1082 = vmatprep.subr.mxu0 0.0
        %1083 = vmatpush2.msra.mxu0 %v895
        %1084 = vmatprep.subr.mxu0 0.0
        %1085 = vmatpush2.msra.mxu0 %v894
        %1086 = vmatprep.mubr.f32.mxu0 %v1018
        %1087 = vmatmul.mubr.f32.gmra.mxu0 %v874
        %v1088 = vpop.f32.mrf.mxu0
        %v1089 = vadd.f32 %v1009, %v1088
        %v1090 = vpop.f32.mrf.mxu0
        %1091 = vmatprep.mubr.f32.mxu0 %v1020
        %1092 = vmatmul.mubr.f32.gmra.mxu0 %v876
        %v1093 = vpop.f32.mrf.mxu0
        %v1094 = vadd.f32 %v1014, %v1093
        %v1095 = vpop.f32.mrf.mxu0
        %1096 = vdwg.mxu0
        %v1097 = vld [vmem:[#allocation3] sm:$0xfc]
        %v1098 = vld [vmem:[#allocation3 + $0x8] sm:$0xfc]
        %v1099 = vld [vmem:[#allocation3 + $0x20] sm:$0x3]
        %v1100 = vld [vmem:[#allocation3 + $0x28] sm:$0x3]
        %s1101 = scalar_lea.vmem [#allocation9], 288
        %v1102 = vld [vmem:[%s1101] sm:$0xff]
        %v1103 = vld [vmem:[%s1101 + $0x8] sm:$0xff]
        %v1104 = vld [vmem:[%s1101 + $0x10] sm:$0xff]
        %v1105 = vld [vmem:[%s1101 + $0x18] sm:$0xff]
        %v1106 = vld [vmem:[%s1101 + $0x20] sm:$0xff]
        %v1107 = vld [vmem:[%s1101 + $0x28] sm:$0xff]
        %v1108 = vld [vmem:[%s1101 + $0x30] sm:$0xff]
        %v1109 = vld [vmem:[%s1101 + $0x38] sm:$0xff]
        %v1110 = vld [vmem:[%s1101 + $0x40] sm:$0xff]
        %v1111 = vld [vmem:[%s1101 + $0x48] sm:$0xff]
        %v1112 = vld [vmem:[%s1101 + $0x50] sm:$0xff]
        %v1113 = vld [vmem:[%s1101 + $0x58] sm:$0xff]
        %v1114 = vld [vmem:[%s1101 + $0x60] sm:$0xff]
        %v1115 = vld [vmem:[%s1101 + $0x68] sm:$0xff]
        %v1116 = vld [vmem:[%s1101 + $0x70] sm:$0xff]
        %v1117 = vld [vmem:[%s1101 + $0x78] sm:$0xff]
        %v1118 = vld [vmem:[%s1101 + $0x80] sm:$0xff]
        %v1119 = vld [vmem:[%s1101 + $0x88] sm:$0xff]
        %vm1124 = vcmask 1045504
        %v1125 = vrot.slane %v1097, 2
        %v1126 = vrot.slane %v876, 2
        %v1127 = vsel %vm1124, %v1125, %v1126
        %v1128 = vrot.slane %v1098, 2
        %v1129 = vrot.slane %v877, 2
        %v1130 = vsel %vm1124, %v1128, %v1129
        %v1131 = vrot.slane %v1099, 2
        %v1132 = vsel %vm1124, %v1126, %v1131
        %v1133 = vrot.slane %v1100, 2
        %v1134 = vsel %vm1124, %v1129, %v1133
        %v1137 = vsel %vm739, %v1130, 0
        %v1139 = vsel %vm739, %v1134, 0
        %1141 = vmatprep.subr.mxu0 0.0
        %1142 = vmatpush1.msra.mxu0 %v1117
        %1143 = vmatprep.subr.mxu0 0.0
        %1144 = vmatpush1.msra.mxu0 %v1116
        %1145 = vmatprep.subr.mxu0 0.0
        %1146 = vmatpush1.msra.mxu0 %v1115
        %1147 = vmatprep.subr.mxu0 0.0
        %1148 = vmatpush1.msra.mxu0 %v1114
        %1149 = vmatprep.subr.mxu0 0.0
        %1150 = vmatpush1.msra.mxu0 %v1113
        %1151 = vmatprep.subr.mxu0 0.0
        %1152 = vmatpush1.msra.mxu0 %v1112
        %1153 = vmatprep.subr.mxu0 0.0
        %1154 = vmatpush1.msra.mxu0 %v1111
        %1155 = vmatprep.subr.mxu0 0.0
        %1156 = vmatpush1.msra.mxu0 %v1110
        %1157 = vmatprep.subr.mxu0 0.0
        %1158 = vmatpush1.msra.mxu0 %v1109
        %1159 = vmatprep.subr.mxu0 0.0
        %1160 = vmatpush1.msra.mxu0 %v1108
        %1161 = vmatprep.subr.mxu0 0.0
        %1162 = vmatpush1.msra.mxu0 %v1107
        %1163 = vmatprep.subr.mxu0 0.0
        %1164 = vmatpush1.msra.mxu0 %v1106
        %1165 = vmatprep.subr.mxu0 0.0
        %1166 = vmatpush1.msra.mxu0 %v1105
        %1167 = vmatprep.subr.mxu0 0.0
        %1168 = vmatpush1.msra.mxu0 %v1104
        %1169 = vmatprep.subr.mxu0 0.0
        %1170 = vmatpush1.msra.mxu0 %v1103
        %1171 = vmatprep.subr.mxu0 0.0
        %1172 = vmatpush1.msra.mxu0 %v1102
        %1173 = vmatprep.subr.mxu0 0.0
        %1174 = vmatpush2.msra.mxu0 0.0
        %1175 = vmatprep.subr.mxu0 0.0
        %1176 = vmatpush2.msra.mxu0 0.0
        %1177 = vmatprep.subr.mxu0 0.0
        %1178 = vmatpush2.msra.mxu0 0.0
        %1179 = vmatprep.subr.mxu0 0.0
        %1180 = vmatpush2.msra.mxu0 0.0
        %1181 = vmatprep.subr.mxu0 0.0
        %1182 = vmatpush2.msra.mxu0 0.0
        %1183 = vmatprep.subr.mxu0 0.0
        %1184 = vmatpush2.msra.mxu0 0.0
        %1185 = vmatprep.subr.mxu0 0.0
        %1186 = vmatpush2.msra.mxu0 0.0
        %1187 = vmatprep.subr.mxu0 0.0
        %1188 = vmatpush2.msra.mxu0 0.0
        %1189 = vmatprep.subr.mxu0 0.0
        %1190 = vmatpush2.msra.mxu0 0.0
        %1191 = vmatprep.subr.mxu0 0.0
        %1192 = vmatpush2.msra.mxu0 0.0
        %1193 = vmatprep.subr.mxu0 0.0
        %1194 = vmatpush2.msra.mxu0 0.0
        %1195 = vmatprep.subr.mxu0 0.0
        %1196 = vmatpush2.msra.mxu0 0.0
        %1197 = vmatprep.subr.mxu0 0.0
        %1198 = vmatpush2.msra.mxu0 0.0
        %1199 = vmatprep.subr.mxu0 0.0
        %1200 = vmatpush2.msra.mxu0 0.0
        %1201 = vmatprep.subr.mxu0 0.0
        %1202 = vmatpush2.msra.mxu0 %v1119
        %1203 = vmatprep.subr.mxu0 0.0
        %1204 = vmatpush2.msra.mxu0 %v1118
        %1205 = vmatprep.mubr.f32.mxu0 %v1137
        %1206 = vmatmul.mubr.f32.gmra.mxu0 %v1127
        %v1207 = vpop.f32.mrf.mxu0
        %v1208 = vadd.f32 0.0, %v1207
        %v1209 = vpop.f32.mrf.mxu0
        %1210 = vmatprep.mubr.f32.mxu0 %v1139
        %1211 = vmatmul.mubr.f32.gmra.mxu0 %v1132
        %v1212 = vpop.f32.mrf.mxu0
        %v1213 = vadd.f32 0.0, %v1212
        %v1214 = vpop.f32.mrf.mxu0
        %1215 = vdwg.mxu0
        %v1216 = vadd.f32 %v1089, %v1208
        %v1217 = vadd.f32 %v1094, %v1213
        %v1218 = vld [vmem:[%s5] sm:$0x1]
        %v1219 = vld [vmem:[%s6] sm:$0x1]
        %v1220 = vadd.f32 %v1216, %v1217
        %1221 = vadd.xlane.f32.xlu0 %v1220
        %v1222 = vpop.xlane.xlu0 %1221
        %v1223 = vrot.slane %v1222, 4
        %v1224 = vadd.f32 %v1222, %v1223
        %v1225 = vrot.slane %v1224, 2
        %v1226 = vadd.f32 %v1224, %v1225
        %v1227 = vrot.slane %v1226, 1
        %v1228 = vadd.f32 %v1226, %v1227
        %s1229 = vtos %v1228
        %s1230 = smul.f32 %s1229, 0.00048828125
        %v1231 = vmul.f32 %v1216, %v1216
        %v1232 = vmul.f32 %v1217, %v1217
        %v1233 = vadd.f32 %v1231, %v1232
        %1234 = vadd.xlane.f32.xlu0 %v1233
        %v1235 = vpop.xlane.xlu0 %1234
        %v1236 = vrot.slane %v1235, 4
        %v1237 = vadd.f32 %v1235, %v1236
        %v1238 = vrot.slane %v1237, 2
        %v1239 = vadd.f32 %v1237, %v1238
        %v1240 = vrot.slane %v1239, 1
        %v1241 = vadd.f32 %v1239, %v1240
        %s1242 = vtos %v1241
        %s1243 = smul.f32 %s1242, 0.00048828125
        %s1244 = smul.f32 %s1230, %s1230
        %s1245 = ssub.f32 %s1243, %s1244
        %v1246 = vstv %s1230
        %v1247 = vsub.f32 %v1216, %v1246
        %v1248 = vsub.f32 %v1217, %v1246
        %s1249 = sadd.f32 %s1245, 1e-05
        %v1250 = vstv %s1249
        %v1251 = vrsqrt.pop %v1250
        %s1252 = vtos %v1251
        %v1253 = vstv %s1252
        %v1254 = vmul.f32 %v1247, %v1253
        %v1255 = vmul.f32 %v1248, %v1253
        %v1257 = vlaneseq
        %v1258 = vshrl.u32 %v1257, 7
        %v1259 = vsub.s32 0, %v1258
        %v1260 = vrot.slane %v1218, %v1259
        %v1262 = vmul.f32 %v1254, %v1260
        %v1263 = vmul.f32 %v1255, %v1260
        %v1265 = vlaneseq
        %v1266 = vshrl.u32 %v1265, 7
        %v1267 = vsub.s32 0, %v1266
        %v1268 = vrot.slane %v1219, %v1267
        %v1270 = vadd.f32 %v1262, %v1268
        %v1271 = vadd.f32 %v1263, %v1268
        %1272 = vst [vmem:[%s325] sm:$0xff] %v1270
        %1273 = vst [vmem:[%s325 + $0x8] sm:$0xff] %v1271
        %s1274 = sand.u32 %s185, 1
        %s1275 = scalar_lea.sflag [#allocation6], %s1274
        %s1276 = sand.u32 %s185, 1
        %s1277 = smul.addr %s1276, 16
        %s1278 = scalar_lea.vmem [#allocation10], %s1277
        // Predicated region
        $region61: #{tpu_custom_call.1} parent=47 // pred_check
          %p1279 = pneg %p195
        $region62: #{tpu_custom_call.1} parent=47 // pred_check_branch
          %1281 = sbr.rel (%p1279) target = $region64
        $region63: #{tpu_custom_call.1} parent=47 // pred_region
          %s1283 = ssub.s32 256, 256
          %1284 = vsyncadd %s1275, %s1283
          %s1285 = smul.addr %s25, 2
          %s1286 = smul.addr %s1285, 128
          %s1287 = scalar_lea.hbm %s7, %s1286
          %s1288 = sshll.u32 %s1278, 4
          %s1289 = int_to_ptr.vmem [resolvable:$true] %s1288
          %1294 = dma.vmem_to_hbm [thread:$0]  %s1289, 256, %s1287, %s1275, 128, 128, 8
        $region64: #{tpu_custom_call.1} parent=47 // pred_fallthru
          _
      $region48: #{tpu_custom_call.1} parent=5 // pred_fallthru
        _
      %p1295 = scmp.le.s32.totalorder 2, %s20
      // Predicated region
      $region65: #{tpu_custom_call.1} parent=5 // pred_check
        %p1296 = pneg %p1295
      $region66: #{tpu_custom_call.1} parent=5 // pred_check_branch
        %1298 = sbr.rel (%p1296) target = $region68
      $region67: #{tpu_custom_call.1} parent=5 // pred_region
        %s1299 = ssub.s32 %s20, 2
        // Predicated region
        $region69: #{tpu_custom_call.1} parent=67 // pred_check
          %p1300 = pneg %p201
        $region70: #{tpu_custom_call.1} parent=67 // pred_check_branch
          %1302 = sbr.rel (%p1300) target = $region72
        $region71: #{tpu_custom_call.1} parent=67 // pred_region
          %s1303 = sand.u32 %s186, 1
          %s1304 = scalar_lea.sflag [#allocation6], %s1303
          %s1305 = sand.u32 %s186, 1
          %s1306 = smul.addr %s1305, 16
          %s1307 = scalar_lea.vmem [#allocation10], %s1306
          %1308 = dma.done %s1304, 256
        $region72: #{tpu_custom_call.1} parent=67 // pred_fallthru
          _
      $region68: #{tpu_custom_call.1} parent=5 // pred_fallthru
        _
    $region6: #{tpu_custom_call.1} parent=1 // loop_footer
      %s24 = sadd.s32 1, %s20
    $region7: #{tpu_custom_call.1} parent=1 // loop_footer_branch
      %19 = sbr.rel target = $region3
    $region8: #{tpu_custom_call.1} parent=1 // loop_exit
      _
    %1309 = vsyncpa [#allocation5], 1
    %s1310 = scalar_lea.sflag [#allocation5], 1
    %1311 = vsyncpa %s1310, 1
    %1312 = vsyncpa [#allocation8], 1
    %1313 = vsyncpa [#allocation6], 1
    %s1314 = scalar_lea.sflag [#allocation6], 1
    %1315 = vsyncpa %s1314, 1

</llo_original>
